<compile_context>
chip_gen: v7x
topology: tpu7x:2x2x1
jax: 0.10.0
libtpu: 0.0.40
codegen_flags: <defaults>
</compile_context>

<pallas_src>
import functools
import math

import jax
import jax.numpy as jnp
from jax import lax
from jax.experimental import pallas as pl
from jax.experimental.pallas import tpu as pltpu

LN_EPS = 1e-5


def _softmax_lastdim(x):
    """Numerically-stable softmax over the last (lane) axis.

    Normalization = EUP reciprocal of the row-sum (two Newton refinements for
    ~f32 accuracy) followed by a broadcast multiply over the scores, so the
    divide never competes for VALU slots.
    """
    m = jnp.max(x, axis=-1, keepdims=True)
    e = jnp.exp(x - m)
    s = jnp.sum(e, axis=-1, keepdims=True)
    r = pl.reciprocal(s, approx=True)
    r = r * (2.0 - s * r)          # Newton step 1
    r = r * (2.0 - s * r)          # Newton step 2
    return e * r


def _layernorm_lanes(x, w, b):
    """LayerNorm over the last (lane) axis of x=(S, H*D) with affine (1, H*D)."""
    n = x.shape[-1]
    mu = jnp.sum(x, axis=-1, keepdims=True) * (1.0 / n)
    xc = x - mu
    var = jnp.sum(xc * xc, axis=-1, keepdims=True) * (1.0 / n)
    inv = lax.rsqrt(var + LN_EPS)
    return xc * inv * w + b


def _skt_kernel(q_ref, k1_ref, v1_ref, k2_ref, v2_ref,
                mask_ref, maskl_ref,
                ln1w_ref, ln1b_ref, ln2w_ref, ln2b_ref,
                out_ref, *, mxu_dtype):
    # Per-batch block shapes:
    #   q (1,H,S,D)  k1/v1 (1,H,R,D)  k2/v2 (1,H,S,R)
    #   mask (1,S,1) maskl (1,R,1)    ln* (1,H*D)      out (1,H,S,D)
    _, H, S, D = q_ref.shape
    R = k1_ref.shape[2]

    mask_c = mask_ref[0]                        # (S, 1)
    maskl_c = maskl_ref[0]                      # (R, 1)
    # Fold the attention scales into the tiny mask vectors: the single mask
    # multiply over K1/K2 then applies the 1/sqrt(...) scaling for free.
    maskl_k = maskl_c * (1.0 / math.sqrt(D))    # branch-1 score scale
    mask_k = mask_c * (1.0 / math.sqrt(S))      # branch-2 score scale

    o1_heads = []
    o2_heads = []
    for h in range(H):                          # static unroll: 2D MXU dots per head
        q_bf = q_ref[0, h].astype(mxu_dtype)                       # (S, D)

        # ----- branch 1: low-rank over the sequence axis -----
        k1_h = (k1_ref[0, h] * maskl_k).astype(mxu_dtype)          # (R, D) mask+scale
        v1_h = (v1_ref[0, h] * maskl_c).astype(mxu_dtype)          # (R, D) mask
        dots = lax.dot_general(q_bf, k1_h, (((1,), (1,)), ((), ())),
                               preferred_element_type=jnp.float32)  # (S, R)
        attn = _softmax_lastdim(dots)                               # (S, R) f32
        o1_heads.append(
            lax.dot_general(attn.astype(mxu_dtype), v1_h,
                            (((1,), (0,)), ((), ())),
                            preferred_element_type=jnp.float32))    # (S, D)

        # ----- branch 2: low-rank over the head_dim axis -----
        k2_h = (k2_ref[0, h] * mask_k).astype(mxu_dtype)           # (S, R) mask+scale
        v2_h = (v2_ref[0, h] * mask_c).astype(mxu_dtype)           # (S, R) mask
        dots_r = lax.dot_general(q_bf, k2_h, (((0,), (0,)), ((), ())),
                                 preferred_element_type=jnp.float32)  # (D, R)
        attn_r = _softmax_lastdim(dots_r)                           # (D, R) f32
        o2_heads.append(
            lax.dot_general(v2_h, attn_r.astype(mxu_dtype),
                            (((1,), (1,)), ((), ())),
                            preferred_element_type=jnp.float32))    # (S, D)

    # Combined-head (lane-axis) layout for the LayerNorms: (S, H*D).
    o1 = jnp.concatenate(o1_heads, axis=-1)
    o2 = jnp.concatenate(o2_heads, axis=-1)

    # Fold the final "(y1 + y2) / 2" into the LayerNorm affine params so no
    # extra multiply touches the full output tile.
    y = (_layernorm_lanes(o1, ln1w_ref[...] * 0.5, ln1b_ref[...] * 0.5) +
         _layernorm_lanes(o2, ln2w_ref[...] * 0.5, ln2b_ref[...] * 0.5))

    for h in range(H):                          # static lane slices back to heads
        out_ref[0, h] = y[:, h * D:(h + 1) * D].astype(out_ref.dtype)


def skt_attention(Q, K, V, mask, params, *, mxu_dtype=jnp.bfloat16):
    """Pallas implementation of DynamicAttention_SKTAttention.forward (cls_embed=None)."""
    B, H, S, D = Q.shape
    idx_l = params['index_set_left']    # (R,) indices into seq_len
    idx_r = params['index_set_right']   # (R,) indices into head_dim
    R = idx_l.shape[0]

    # Glue (index sets are fixed module "parameters"): the R-row gather for
    # branch 1 and the lane-axis gather for branch 2 stay in the wrapper.
    K1 = K[:, :, idx_l, :]              # (B, H, R, D)
    V1 = V[:, :, idx_l, :]
    K2 = K[:, :, :, idx_r]              # (B, H, S, R)
    V2 = V[:, :, :, idx_r]

    mask_col = mask[:, :, None]                  # (B, S, 1) sublane-aligned column
    maskl_col = mask[:, idx_l][:, :, None]       # (B, R, 1)

    ln1_w = params['ln1_w'].reshape(1, H * D)
    ln1_b = params['ln1_b'].reshape(1, H * D)
    ln2_w = params['ln2_w'].reshape(1, H * D)
    ln2_b = params['ln2_b'].reshape(1, H * D)

    def im4(b):
        return (b, 0, 0, 0)

    def im3(b):
        return (b, 0, 0)

    def imw(b):
        return (0, 0)

    kernel = functools.partial(_skt_kernel, mxu_dtype=mxu_dtype)
    return pl.pallas_call(
        kernel,
        out_shape=jax.ShapeDtypeStruct((B, H, S, D), Q.dtype),
        grid=(B,),
        in_specs=[
            pl.BlockSpec((1, H, S, D), im4),   # Q
            pl.BlockSpec((1, H, R, D), im4),   # K1
            pl.BlockSpec((1, H, R, D), im4),   # V1
            pl.BlockSpec((1, H, S, R), im4),   # K2
            pl.BlockSpec((1, H, S, R), im4),   # V2
            pl.BlockSpec((1, S, 1), im3),      # mask column
            pl.BlockSpec((1, R, 1), im3),      # mask gathered at idx_l
            pl.BlockSpec((1, H * D), imw),     # ln1 weight
            pl.BlockSpec((1, H * D), imw),     # ln1 bias
            pl.BlockSpec((1, H * D), imw),     # ln2 weight
            pl.BlockSpec((1, H * D), imw),     # ln2 bias
        ],
        out_specs=pl.BlockSpec((1, H, S, D), im4),
        compiler_params=pltpu.CompilerParams(
            dimension_semantics=("parallel",)),
    )(Q, K1, V1, K2, V2, mask_col, maskl_col, ln1_w, ln1_b, ln2_w, ln2_b)


def skt_attention_reference(Q, K, V, mask, params, *, mxu_dtype=jnp.float32):
    """Pure-JAX reference mirroring the PyTorch forward (eval mode).

    mxu_dtype=bfloat16 mirrors the kernel's mixed-precision matmuls (bf16
    operands, f32 accumulation); mxu_dtype=float32 is the exact module math.
    """
    B, H, S, D = Q.shape
    idx_l = params['index_set_left']
    idx_r = params['index_set_right']
    Km = K * mask[:, None, :, None]
    Vm = V * mask[:, None, :, None]
    K1 = Km[:, :, idx_l, :]
    V1 = Vm[:, :, idx_l, :]
    K2 = Km[:, :, :, idx_r]
    V2 = Vm[:, :, :, idx_r]

    def mm(eq, a, b):
        return jnp.einsum(eq, a.astype(mxu_dtype), b.astype(mxu_dtype),
                          preferred_element_type=jnp.float32)

    dots = mm('bhsd,bhrd->bhsr', Q, K1) / math.sqrt(D)
    attn = jax.nn.softmax(dots, axis=-1)
    dots_r = mm('bhsd,bhsr->bhdr', Q, K2) / math.sqrt(S)
    attn_r = jax.nn.softmax(dots_r, axis=-1)            # (B, H, D, R)
    o1 = mm('bhsr,bhrd->bhsd', attn, V1)
    o2 = mm('bhsr,bhdr->bhsd', V2, attn_r)

    def combine(x):
        return jnp.swapaxes(x, 1, 2).reshape(B, S, H * D)

    def split(x):
        return jnp.swapaxes(x.reshape(B, S, H, D), 1, 2)

    def ln(x, w, b):
        mu = x.mean(-1, keepdims=True)
        var = ((x - mu) ** 2).mean(-1, keepdims=True)
        return (x - mu) / jnp.sqrt(var + LN_EPS) * w + b

    y1 = split(ln(combine(o1), params['ln1_w'], params['ln1_b']))
    y2 = split(ln(combine(o2), params['ln2_w'], params['ln2_b']))
    return y1 / 2 + y2 / 2


if __name__ == "__main__":
    # Config (matching the module's __init__):
    #   num_head=2, head_dim=16, transformer_dim=32, max_seq_len=16, num_landmarks=4
    B, H, D, S, R = 2, 2, 16, 16, 4

    key = jax.random.PRNGKey(0)
    kq, kk, kv, km, kw1, kb1, kw2, kb2, kil, kir = jax.random.split(key, 10)

    Q = jax.random.normal(kq, (B, H, S, D), jnp.float32)
    K = jax.random.normal(kk, (B, H, S, D), jnp.float32)
    V = jax.random.normal(kv, (B, H, S, D), jnp.float32)
    mask = (jax.random.uniform(km, (B, S)) > 0.3).astype(jnp.float32)

    params = {
        # deterministic stand-ins for torch.randperm(...)[:dp_rank]
        'index_set_left': jax.random.permutation(kil, S)[:R],
        'index_set_right': jax.random.permutation(kir, D)[:R],
        # LayerNorm params over num_head*head_dim (perturbed from 1/0 to exercise them)
        'ln1_w': 1.0 + 0.1 * jax.random.normal(kw1, (H * D,), jnp.float32),
        'ln1_b': 0.1 * jax.random.normal(kb1, (H * D,), jnp.float32),
        'ln2_w': 1.0 + 0.1 * jax.random.normal(kw2, (H * D,), jnp.float32),
        'ln2_b': 0.1 * jax.random.normal(kb2, (H * D,), jnp.float32),
    }

    # Default fast path: bf16 MXU operands, f32 accumulation / element-wise.
    out = jax.block_until_ready(skt_attention(Q, K, V, mask, params))
    assert out.shape == (B, H, S, D)
    ref_mixed = jax.block_until_ready(
        skt_attention_reference(Q, K, V, mask, params, mxu_dtype=jnp.bfloat16))
    assert jnp.allclose(out, ref_mixed, rtol=2.5e-2, atol=2.5e-2), \
        "mismatch vs mixed-precision reference"

    # Exact path: full-f32 matmuls match the PyTorch-equivalent reference tightly.
    out_f32 = jax.block_until_ready(
        skt_attention(Q, K, V, mask, params, mxu_dtype=jnp.float32))
    ref_f32 = jax.block_until_ready(
        skt_attention_reference(Q, K, V, mask, params, mxu_dtype=jnp.float32))
    assert jnp.allclose(out_f32, ref_f32, rtol=1e-4, atol=1e-4), \
        "mismatch vs f32 reference"

    print("KERNEL_OK")
</pallas_src>

<mosaic_0001>
module attributes {stable_mosaic.version = 11 : i64} {
  func.func @_skt_kernel(%arg0: i32, %arg1: memref<1x2x16x16xf32, #tpu.memory_space<vmem>>, %arg2: memref<1x2x4x16xf32, #tpu.memory_space<vmem>>, %arg3: memref<1x2x4x16xf32, #tpu.memory_space<vmem>>, %arg4: memref<1x2x16x4xf32, #tpu.memory_space<vmem>>, %arg5: memref<1x2x16x4xf32, #tpu.memory_space<vmem>>, %arg6: memref<1x16x1xf32, #tpu.memory_space<vmem>>, %arg7: memref<1x4x1xf32, #tpu.memory_space<vmem>>, %arg8: memref<1x32xf32, #tpu.memory_space<vmem>>, %arg9: memref<1x32xf32, #tpu.memory_space<vmem>>, %arg10: memref<1x32xf32, #tpu.memory_space<vmem>>, %arg11: memref<1x32xf32, #tpu.memory_space<vmem>>, %arg12: memref<1x2x16x16xf32, #tpu.memory_space<vmem>>) attributes {dimension_semantics = [#tpu.dimension_semantics<parallel>], iteration_bounds = array<i64: 2>, scalar_prefetch = 0 : i64, scratch_operands = 0 : i64, tpu.core_type = #tpu.core_type<tc>, window_params = [{transform_indices = @transform_0, window_bounds = array<i64: 1, 2, 16, 16>}, {transform_indices = @transform_1, window_bounds = array<i64: 1, 2, 4, 16>}, {transform_indices = @transform_2, window_bounds = array<i64: 1, 2, 4, 16>}, {transform_indices = @transform_3, window_bounds = array<i64: 1, 2, 16, 4>}, {transform_indices = @transform_4, window_bounds = array<i64: 1, 2, 16, 4>}, {transform_indices = @transform_5, window_bounds = array<i64: 1, 16, 1>}, {transform_indices = @transform_6, window_bounds = array<i64: 1, 4, 1>}, {pipeline_mode = #tpu.pipeline_mode<synchronous>, transform_indices = @transform_7, window_bounds = array<i64: 1, 32>}, {pipeline_mode = #tpu.pipeline_mode<synchronous>, transform_indices = @transform_8, window_bounds = array<i64: 1, 32>}, {pipeline_mode = #tpu.pipeline_mode<synchronous>, transform_indices = @transform_9, window_bounds = array<i64: 1, 32>}, {pipeline_mode = #tpu.pipeline_mode<synchronous>, transform_indices = @transform_10, window_bounds = array<i64: 1, 32>}, {transform_indices = @transform_11, window_bounds = array<i64: 1, 2, 16, 16>}]} {
    %c0 = arith.constant 0 : index
    %c0_0 = arith.constant 0 : index
    %c0_1 = arith.constant 0 : index
    %0 = vector.load %arg6[%c0, %c0_0, %c0_1] : memref<1x16x1xf32, #tpu.memory_space<vmem>>, vector<1x16x1xf32>
    %1 = vector.shape_cast %0 : vector<1x16x1xf32> to vector<16x1xf32>
    %c0_2 = arith.constant 0 : index
    %c0_3 = arith.constant 0 : index
    %c0_4 = arith.constant 0 : index
    %2 = vector.load %arg7[%c0_2, %c0_3, %c0_4] : memref<1x4x1xf32, #tpu.memory_space<vmem>>, vector<1x4x1xf32>
    %3 = vector.shape_cast %2 : vector<1x4x1xf32> to vector<4x1xf32>
    %cst = arith.constant 2.500000e-01 : f32
    %4 = vector.broadcast %cst : f32 to vector<4x1xf32>
    %5 = arith.mulf %3, %4 : vector<4x1xf32>
    %cst_5 = arith.constant 2.500000e-01 : f32
    %6 = vector.broadcast %cst_5 : f32 to vector<16x1xf32>
    %7 = arith.mulf %1, %6 : vector<16x1xf32>
    %c0_6 = arith.constant 0 : index
    %c0_7 = arith.constant 0 : index
    %c0_8 = arith.constant 0 : index
    %c0_9 = arith.constant 0 : index
    %8 = vector.load %arg1[%c0_6, %c0_7, %c0_8, %c0_9] : memref<1x2x16x16xf32, #tpu.memory_space<vmem>>, vector<1x1x16x16xf32>
    %9 = vector.shape_cast %8 : vector<1x1x16x16xf32> to vector<16x16xf32>
    %10 = arith.truncf %9 : vector<16x16xf32> to vector<16x16xbf16>
    %c0_10 = arith.constant 0 : index
    %c0_11 = arith.constant 0 : index
    %c0_12 = arith.constant 0 : index
    %c0_13 = arith.constant 0 : index
    %11 = vector.load %arg2[%c0_10, %c0_11, %c0_12, %c0_13] : memref<1x2x4x16xf32, #tpu.memory_space<vmem>>, vector<1x1x4x16xf32>
    %12 = vector.shape_cast %11 : vector<1x1x4x16xf32> to vector<4x16xf32>
    %13 = vector.broadcast %5 : vector<4x1xf32> to vector<4x16xf32>
    %14 = arith.mulf %12, %13 : vector<4x16xf32>
    %15 = arith.truncf %14 : vector<4x16xf32> to vector<4x16xbf16>
    %c0_14 = arith.constant 0 : index
    %c0_15 = arith.constant 0 : index
    %c0_16 = arith.constant 0 : index
    %c0_17 = arith.constant 0 : index
    %16 = vector.load %arg3[%c0_14, %c0_15, %c0_16, %c0_17] : memref<1x2x4x16xf32, #tpu.memory_space<vmem>>, vector<1x1x4x16xf32>
    %17 = vector.shape_cast %16 : vector<1x1x4x16xf32> to vector<4x16xf32>
    %18 = vector.broadcast %3 : vector<4x1xf32> to vector<4x16xf32>
    %19 = arith.mulf %17, %18 : vector<4x16xf32>
    %20 = arith.truncf %19 : vector<4x16xf32> to vector<4x16xbf16>
    %cst_18 = arith.constant dense<0.000000e+00> : vector<16x4xf32>
    %21 = tpu.matmul %10, %15, %cst_18 {dimension_numbers = #tpu.dot_dimension_numbers<[1], [1], [0], [0], [0, 0, 1, 0], [], []>} : vector<16x16xbf16>, vector<4x16xbf16>, vector<16x4xf32> -> vector<16x4xf32>
    %cst_19 = arith.constant dense<0xFF800000> : vector<16xf32>
    %22 = vector.multi_reduction <maximumf>, %21, %cst_19 [1] : vector<16x4xf32> to vector<16xf32>
    %23 = vector.shape_cast %22 : vector<16xf32> to vector<16x1xf32>
    %24 = vector.broadcast %23 : vector<16x1xf32> to vector<16x4xf32>
    %25 = arith.subf %21, %24 : vector<16x4xf32>
    %26 = math.exp %25 : vector<16x4xf32>
    %cst_20 = arith.constant dense<0.000000e+00> : vector<16xf32>
    %27 = vector.multi_reduction <add>, %26, %cst_20 [1] : vector<16x4xf32> to vector<16xf32>
    %28 = vector.shape_cast %27 : vector<16xf32> to vector<16x1xf32>
    %29 = tpu.reciprocal %28 {approx = true} : vector<16x1xf32> -> vector<16x1xf32>
    %30 = arith.mulf %28, %29 : vector<16x1xf32>
    %cst_21 = arith.constant 2.000000e+00 : f32
    %31 = vector.broadcast %cst_21 : f32 to vector<16x1xf32>
    %32 = arith.subf %31, %30 : vector<16x1xf32>
    %33 = arith.mulf %29, %32 : vector<16x1xf32>
    %34 = arith.mulf %28, %33 : vector<16x1xf32>
    %cst_22 = arith.constant 2.000000e+00 : f32
    %35 = vector.broadcast %cst_22 : f32 to vector<16x1xf32>
    %36 = arith.subf %35, %34 : vector<16x1xf32>
    %37 = arith.mulf %33, %36 : vector<16x1xf32>
    %38 = vector.broadcast %37 : vector<16x1xf32> to vector<16x4xf32>
    %39 = arith.mulf %26, %38 : vector<16x4xf32>
    %40 = arith.truncf %39 : vector<16x4xf32> to vector<16x4xbf16>
    %cst_23 = arith.constant dense<0.000000e+00> : vector<16x16xf32>
    %41 = tpu.matmul %40, %20, %cst_23 {dimension_numbers = #tpu.dot_dimension_numbers<[1], [0], [0], [1], [0, 0, 1, 1], [], []>} : vector<16x4xbf16>, vector<4x16xbf16>, vector<16x16xf32> -> vector<16x16xf32>
    %c0_24 = arith.constant 0 : index
    %c0_25 = arith.constant 0 : index
    %c0_26 = arith.constant 0 : index
    %c0_27 = arith.constant 0 : index
    %42 = vector.load %arg4[%c0_24, %c0_25, %c0_26, %c0_27] : memref<1x2x16x4xf32, #tpu.memory_space<vmem>>, vector<1x1x16x4xf32>
    %43 = vector.shape_cast %42 : vector<1x1x16x4xf32> to vector<16x4xf32>
    %44 = vector.broadcast %7 : vector<16x1xf32> to vector<16x4xf32>
    %45 = arith.mulf %43, %44 : vector<16x4xf32>
    %46 = arith.truncf %45 : vector<16x4xf32> to vector<16x4xbf16>
    %c0_28 = arith.constant 0 : index
    %c0_29 = arith.constant 0 : index
    %c0_30 = arith.constant 0 : index
    %c0_31 = arith.constant 0 : index
    %47 = vector.load %arg5[%c0_28, %c0_29, %c0_30, %c0_31] : memref<1x2x16x4xf32, #tpu.memory_space<vmem>>, vector<1x1x16x4xf32>
    %48 = vector.shape_cast %47 : vector<1x1x16x4xf32> to vector<16x4xf32>
    %49 = vector.broadcast %1 : vector<16x1xf32> to vector<16x4xf32>
    %50 = arith.mulf %48, %49 : vector<16x4xf32>
    %51 = arith.truncf %50 : vector<16x4xf32> to vector<16x4xbf16>
    %cst_32 = arith.constant dense<0.000000e+00> : vector<16x4xf32>
    %52 = tpu.matmul %10, %46, %cst_32 {dimension_numbers = #tpu.dot_dimension_numbers<[0], [0], [1], [1], [0, 1, 1, 1], [], []>} : vector<16x16xbf16>, vector<16x4xbf16>, vector<16x4xf32> -> vector<16x4xf32>
    %cst_33 = arith.constant dense<0xFF800000> : vector<16xf32>
    %53 = vector.multi_reduction <maximumf>, %52, %cst_33 [1] : vector<16x4xf32> to vector<16xf32>
    %54 = vector.shape_cast %53 : vector<16xf32> to vector<16x1xf32>
    %55 = vector.broadcast %54 : vector<16x1xf32> to vector<16x4xf32>
    %56 = arith.subf %52, %55 : vector<16x4xf32>
    %57 = math.exp %56 : vector<16x4xf32>
    %cst_34 = arith.constant dense<0.000000e+00> : vector<16xf32>
    %58 = vector.multi_reduction <add>, %57, %cst_34 [1] : vector<16x4xf32> to vector<16xf32>
    %59 = vector.shape_cast %58 : vector<16xf32> to vector<16x1xf32>
    %60 = tpu.reciprocal %59 {approx = true} : vector<16x1xf32> -> vector<16x1xf32>
    %61 = arith.mulf %59, %60 : vector<16x1xf32>
    %cst_35 = arith.constant 2.000000e+00 : f32
    %62 = vector.broadcast %cst_35 : f32 to vector<16x1xf32>
    %63 = arith.subf %62, %61 : vector<16x1xf32>
    %64 = arith.mulf %60, %63 : vector<16x1xf32>
    %65 = arith.mulf %59, %64 : vector<16x1xf32>
    %cst_36 = arith.constant 2.000000e+00 : f32
    %66 = vector.broadcast %cst_36 : f32 to vector<16x1xf32>
    %67 = arith.subf %66, %65 : vector<16x1xf32>
    %68 = arith.mulf %64, %67 : vector<16x1xf32>
    %69 = vector.broadcast %68 : vector<16x1xf32> to vector<16x4xf32>
    %70 = arith.mulf %57, %69 : vector<16x4xf32>
    %71 = arith.truncf %70 : vector<16x4xf32> to vector<16x4xbf16>
    %cst_37 = arith.constant dense<0.000000e+00> : vector<16x16xf32>
    %72 = tpu.matmul %51, %71, %cst_37 {dimension_numbers = #tpu.dot_dimension_numbers<[1], [1], [0], [0], [0, 0, 1, 0], [], []>} : vector<16x4xbf16>, vector<16x4xbf16>, vector<16x16xf32> -> vector<16x16xf32>
    %c0_38 = arith.constant 0 : index
    %c1 = arith.constant 1 : index
    %c0_39 = arith.constant 0 : index
    %c0_40 = arith.constant 0 : index
    %73 = vector.load %arg1[%c0_38, %c1, %c0_39, %c0_40] : memref<1x2x16x16xf32, #tpu.memory_space<vmem>>, vector<1x1x16x16xf32>
    %74 = vector.shape_cast %73 : vector<1x1x16x16xf32> to vector<16x16xf32>
    %75 = arith.truncf %74 : vector<16x16xf32> to vector<16x16xbf16>
    %c0_41 = arith.constant 0 : index
    %c1_42 = arith.constant 1 : index
    %c0_43 = arith.constant 0 : index
    %c0_44 = arith.constant 0 : index
    %76 = vector.load %arg2[%c0_41, %c1_42, %c0_43, %c0_44] : memref<1x2x4x16xf32, #tpu.memory_space<vmem>>, vector<1x1x4x16xf32>
    %77 = vector.shape_cast %76 : vector<1x1x4x16xf32> to vector<4x16xf32>
    %78 = vector.broadcast %5 : vector<4x1xf32> to vector<4x16xf32>
    %79 = arith.mulf %77, %78 : vector<4x16xf32>
    %80 = arith.truncf %79 : vector<4x16xf32> to vector<4x16xbf16>
    %c0_45 = arith.constant 0 : index
    %c1_46 = arith.constant 1 : index
    %c0_47 = arith.constant 0 : index
    %c0_48 = arith.constant 0 : index
    %81 = vector.load %arg3[%c0_45, %c1_46, %c0_47, %c0_48] : memref<1x2x4x16xf32, #tpu.memory_space<vmem>>, vector<1x1x4x16xf32>
    %82 = vector.shape_cast %81 : vector<1x1x4x16xf32> to vector<4x16xf32>
    %83 = vector.broadcast %3 : vector<4x1xf32> to vector<4x16xf32>
    %84 = arith.mulf %82, %83 : vector<4x16xf32>
    %85 = arith.truncf %84 : vector<4x16xf32> to vector<4x16xbf16>
    %cst_49 = arith.constant dense<0.000000e+00> : vector<16x4xf32>
    %86 = tpu.matmul %75, %80, %cst_49 {dimension_numbers = #tpu.dot_dimension_numbers<[1], [1], [0], [0], [0, 0, 1, 0], [], []>} : vector<16x16xbf16>, vector<4x16xbf16>, vector<16x4xf32> -> vector<16x4xf32>
    %cst_50 = arith.constant dense<0xFF800000> : vector<16xf32>
    %87 = vector.multi_reduction <maximumf>, %86, %cst_50 [1] : vector<16x4xf32> to vector<16xf32>
    %88 = vector.shape_cast %87 : vector<16xf32> to vector<16x1xf32>
    %89 = vector.broadcast %88 : vector<16x1xf32> to vector<16x4xf32>
    %90 = arith.subf %86, %89 : vector<16x4xf32>
    %91 = math.exp %90 : vector<16x4xf32>
    %cst_51 = arith.constant dense<0.000000e+00> : vector<16xf32>
    %92 = vector.multi_reduction <add>, %91, %cst_51 [1] : vector<16x4xf32> to vector<16xf32>
    %93 = vector.shape_cast %92 : vector<16xf32> to vector<16x1xf32>
    %94 = tpu.reciprocal %93 {approx = true} : vector<16x1xf32> -> vector<16x1xf32>
    %95 = arith.mulf %93, %94 : vector<16x1xf32>
    %cst_52 = arith.constant 2.000000e+00 : f32
    %96 = vector.broadcast %cst_52 : f32 to vector<16x1xf32>
    %97 = arith.subf %96, %95 : vector<16x1xf32>
    %98 = arith.mulf %94, %97 : vector<16x1xf32>
    %99 = arith.mulf %93, %98 : vector<16x1xf32>
    %cst_53 = arith.constant 2.000000e+00 : f32
    %100 = vector.broadcast %cst_53 : f32 to vector<16x1xf32>
    %101 = arith.subf %100, %99 : vector<16x1xf32>
    %102 = arith.mulf %98, %101 : vector<16x1xf32>
    %103 = vector.broadcast %102 : vector<16x1xf32> to vector<16x4xf32>
    %104 = arith.mulf %91, %103 : vector<16x4xf32>
    %105 = arith.truncf %104 : vector<16x4xf32> to vector<16x4xbf16>
    %cst_54 = arith.constant dense<0.000000e+00> : vector<16x16xf32>
    %106 = tpu.matmul %105, %85, %cst_54 {dimension_numbers = #tpu.dot_dimension_numbers<[1], [0], [0], [1], [0, 0, 1, 1], [], []>} : vector<16x4xbf16>, vector<4x16xbf16>, vector<16x16xf32> -> vector<16x16xf32>
    %c0_55 = arith.constant 0 : index
    %c1_56 = arith.constant 1 : index
    %c0_57 = arith.constant 0 : index
    %c0_58 = arith.constant 0 : index
    %107 = vector.load %arg4[%c0_55, %c1_56, %c0_57, %c0_58] : memref<1x2x16x4xf32, #tpu.memory_space<vmem>>, vector<1x1x16x4xf32>
    %108 = vector.shape_cast %107 : vector<1x1x16x4xf32> to vector<16x4xf32>
    %109 = vector.broadcast %7 : vector<16x1xf32> to vector<16x4xf32>
    %110 = arith.mulf %108, %109 : vector<16x4xf32>
    %111 = arith.truncf %110 : vector<16x4xf32> to vector<16x4xbf16>
    %c0_59 = arith.constant 0 : index
    %c1_60 = arith.constant 1 : index
    %c0_61 = arith.constant 0 : index
    %c0_62 = arith.constant 0 : index
    %112 = vector.load %arg5[%c0_59, %c1_60, %c0_61, %c0_62] : memref<1x2x16x4xf32, #tpu.memory_space<vmem>>, vector<1x1x16x4xf32>
    %113 = vector.shape_cast %112 : vector<1x1x16x4xf32> to vector<16x4xf32>
    %114 = vector.broadcast %1 : vector<16x1xf32> to vector<16x4xf32>
    %115 = arith.mulf %113, %114 : vector<16x4xf32>
    %116 = arith.truncf %115 : vector<16x4xf32> to vector<16x4xbf16>
    %cst_63 = arith.constant dense<0.000000e+00> : vector<16x4xf32>
    %117 = tpu.matmul %75, %111, %cst_63 {dimension_numbers = #tpu.dot_dimension_numbers<[0], [0], [1], [1], [0, 1, 1, 1], [], []>} : vector<16x16xbf16>, vector<16x4xbf16>, vector<16x4xf32> -> vector<16x4xf32>
    %cst_64 = arith.constant dense<0xFF800000> : vector<16xf32>
    %118 = vector.multi_reduction <maximumf>, %117, %cst_64 [1] : vector<16x4xf32> to vector<16xf32>
    %119 = vector.shape_cast %118 : vector<16xf32> to vector<16x1xf32>
    %120 = vector.broadcast %119 : vector<16x1xf32> to vector<16x4xf32>
    %121 = arith.subf %117, %120 : vector<16x4xf32>
    %122 = math.exp %121 : vector<16x4xf32>
    %cst_65 = arith.constant dense<0.000000e+00> : vector<16xf32>
    %123 = vector.multi_reduction <add>, %122, %cst_65 [1] : vector<16x4xf32> to vector<16xf32>
    %124 = vector.shape_cast %123 : vector<16xf32> to vector<16x1xf32>
    %125 = tpu.reciprocal %124 {approx = true} : vector<16x1xf32> -> vector<16x1xf32>
    %126 = arith.mulf %124, %125 : vector<16x1xf32>
    %cst_66 = arith.constant 2.000000e+00 : f32
    %127 = vector.broadcast %cst_66 : f32 to vector<16x1xf32>
    %128 = arith.subf %127, %126 : vector<16x1xf32>
    %129 = arith.mulf %125, %128 : vector<16x1xf32>
    %130 = arith.mulf %124, %129 : vector<16x1xf32>
    %cst_67 = arith.constant 2.000000e+00 : f32
    %131 = vector.broadcast %cst_67 : f32 to vector<16x1xf32>
    %132 = arith.subf %131, %130 : vector<16x1xf32>
    %133 = arith.mulf %129, %132 : vector<16x1xf32>
    %134 = vector.broadcast %133 : vector<16x1xf32> to vector<16x4xf32>
    %135 = arith.mulf %122, %134 : vector<16x4xf32>
    %136 = arith.truncf %135 : vector<16x4xf32> to vector<16x4xbf16>
    %cst_68 = arith.constant dense<0.000000e+00> : vector<16x16xf32>
    %137 = tpu.matmul %116, %136, %cst_68 {dimension_numbers = #tpu.dot_dimension_numbers<[1], [1], [0], [0], [0, 0, 1, 0], [], []>} : vector<16x4xbf16>, vector<16x4xbf16>, vector<16x16xf32> -> vector<16x16xf32>
    %138 = tpu.concatenate %41, %106 in 1 : vector<16x16xf32>, vector<16x16xf32> -> vector<16x32xf32>
    %139 = tpu.concatenate %72, %137 in 1 : vector<16x16xf32>, vector<16x16xf32> -> vector<16x32xf32>
    %c0_69 = arith.constant 0 : index
    %c0_70 = arith.constant 0 : index
    %140 = vector.load %arg8[%c0_69, %c0_70] : memref<1x32xf32, #tpu.memory_space<vmem>>, vector<1x32xf32>
    %cst_71 = arith.constant 5.000000e-01 : f32
    %141 = vector.broadcast %cst_71 : f32 to vector<1x32xf32>
    %142 = arith.mulf %140, %141 : vector<1x32xf32>
    %c0_72 = arith.constant 0 : index
    %c0_73 = arith.constant 0 : index
    %143 = vector.load %arg9[%c0_72, %c0_73] : memref<1x32xf32, #tpu.memory_space<vmem>>, vector<1x32xf32>
    %cst_74 = arith.constant 5.000000e-01 : f32
    %144 = vector.broadcast %cst_74 : f32 to vector<1x32xf32>
    %145 = arith.mulf %143, %144 : vector<1x32xf32>
    %cst_75 = arith.constant dense<0.000000e+00> : vector<16xf32>
    %146 = vector.multi_reduction <add>, %138, %cst_75 [1] : vector<16x32xf32> to vector<16xf32>
    %147 = vector.shape_cast %146 : vector<16xf32> to vector<16x1xf32>
    %cst_76 = arith.constant 3.125000e-02 : f32
    %148 = vector.broadcast %cst_76 : f32 to vector<16x1xf32>
    %149 = arith.mulf %147, %148 : vector<16x1xf32>
    %150 = vector.broadcast %149 : vector<16x1xf32> to vector<16x32xf32>
    %151 = arith.subf %138, %150 : vector<16x32xf32>
    %152 = arith.mulf %151, %151 : vector<16x32xf32>
    %cst_77 = arith.constant dense<0.000000e+00> : vector<16xf32>
    %153 = vector.multi_reduction <add>, %152, %cst_77 [1] : vector<16x32xf32> to vector<16xf32>
    %154 = vector.shape_cast %153 : vector<16xf32> to vector<16x1xf32>
    %cst_78 = arith.constant 3.125000e-02 : f32
    %155 = vector.broadcast %cst_78 : f32 to vector<16x1xf32>
    %156 = arith.mulf %154, %155 : vector<16x1xf32>
    %cst_79 = arith.constant 9.99999974E-6 : f32
    %157 = vector.broadcast %cst_79 : f32 to vector<16x1xf32>
    %158 = arith.addf %156, %157 : vector<16x1xf32>
    %159 = math.rsqrt %158 : vector<16x1xf32>
    %160 = vector.broadcast %159 : vector<16x1xf32> to vector<16x32xf32>
    %161 = arith.mulf %151, %160 : vector<16x32xf32>
    %162 = vector.broadcast %142 : vector<1x32xf32> to vector<16x32xf32>
    %163 = arith.mulf %161, %162 : vector<16x32xf32>
    %164 = vector.broadcast %145 : vector<1x32xf32> to vector<16x32xf32>
    %165 = arith.addf %163, %164 : vector<16x32xf32>
    %c0_80 = arith.constant 0 : index
    %c0_81 = arith.constant 0 : index
    %166 = vector.load %arg10[%c0_80, %c0_81] : memref<1x32xf32, #tpu.memory_space<vmem>>, vector<1x32xf32>
    %cst_82 = arith.constant 5.000000e-01 : f32
    %167 = vector.broadcast %cst_82 : f32 to vector<1x32xf32>
    %168 = arith.mulf %166, %167 : vector<1x32xf32>
    %c0_83 = arith.constant 0 : index
    %c0_84 = arith.constant 0 : index
    %169 = vector.load %arg11[%c0_83, %c0_84] : memref<1x32xf32, #tpu.memory_space<vmem>>, vector<1x32xf32>
    %cst_85 = arith.constant 5.000000e-01 : f32
    %170 = vector.broadcast %cst_85 : f32 to vector<1x32xf32>
    %171 = arith.mulf %169, %170 : vector<1x32xf32>
    %cst_86 = arith.constant dense<0.000000e+00> : vector<16xf32>
    %172 = vector.multi_reduction <add>, %139, %cst_86 [1] : vector<16x32xf32> to vector<16xf32>
    %173 = vector.shape_cast %172 : vector<16xf32> to vector<16x1xf32>
    %cst_87 = arith.constant 3.125000e-02 : f32
    %174 = vector.broadcast %cst_87 : f32 to vector<16x1xf32>
    %175 = arith.mulf %173, %174 : vector<16x1xf32>
    %176 = vector.broadcast %175 : vector<16x1xf32> to vector<16x32xf32>
    %177 = arith.subf %139, %176 : vector<16x32xf32>
    %178 = arith.mulf %177, %177 : vector<16x32xf32>
    %cst_88 = arith.constant dense<0.000000e+00> : vector<16xf32>
    %179 = vector.multi_reduction <add>, %178, %cst_88 [1] : vector<16x32xf32> to vector<16xf32>
    %180 = vector.shape_cast %179 : vector<16xf32> to vector<16x1xf32>
    %cst_89 = arith.constant 3.125000e-02 : f32
    %181 = vector.broadcast %cst_89 : f32 to vector<16x1xf32>
    %182 = arith.mulf %180, %181 : vector<16x1xf32>
    %cst_90 = arith.constant 9.99999974E-6 : f32
    %183 = vector.broadcast %cst_90 : f32 to vector<16x1xf32>
    %184 = arith.addf %182, %183 : vector<16x1xf32>
    %185 = math.rsqrt %184 : vector<16x1xf32>
    %186 = vector.broadcast %185 : vector<16x1xf32> to vector<16x32xf32>
    %187 = arith.mulf %177, %186 : vector<16x32xf32>
    %188 = vector.broadcast %168 : vector<1x32xf32> to vector<16x32xf32>
    %189 = arith.mulf %187, %188 : vector<16x32xf32>
    %190 = vector.broadcast %171 : vector<1x32xf32> to vector<16x32xf32>
    %191 = arith.addf %189, %190 : vector<16x32xf32>
    %192 = arith.addf %165, %191 : vector<16x32xf32>
    %193 = vector.extract_strided_slice %192 {offsets = [0, 0], sizes = [16, 16], strides = [1, 1]} : vector<16x32xf32> to vector<16x16xf32>
    %c0_91 = arith.constant 0 : index
    %c0_92 = arith.constant 0 : index
    %c0_93 = arith.constant 0 : index
    %c0_94 = arith.constant 0 : index
    %194 = vector.load %arg12[%c0_91, %c0_92, %c0_93, %c0_94] : memref<1x2x16x16xf32, #tpu.memory_space<vmem>>, vector<1x1x16x16xf32>
    %195 = vector.shape_cast %194 : vector<1x1x16x16xf32> to vector<16x16xf32>
    %196 = vector.shape_cast %193 : vector<16x16xf32> to vector<1x1x16x16xf32>
    tpu.vector_store %arg12[%c0_91, %c0_92, %c0_93, %c0_94], %196 {strides = array<i32>} : memref<1x2x16x16xf32, #tpu.memory_space<vmem>>, vector<1x1x16x16xf32>,
    %197 = vector.extract_strided_slice %192 {offsets = [0, 16], sizes = [16, 16], strides = [1, 1]} : vector<16x32xf32> to vector<16x16xf32>
    %c0_95 = arith.constant 0 : index
    %c1_96 = arith.constant 1 : index
    %c0_97 = arith.constant 0 : index
    %c0_98 = arith.constant 0 : index
    %198 = vector.load %arg12[%c0_95, %c1_96, %c0_97, %c0_98] : memref<1x2x16x16xf32, #tpu.memory_space<vmem>>, vector<1x1x16x16xf32>
    %199 = vector.shape_cast %198 : vector<1x1x16x16xf32> to vector<16x16xf32>
    %200 = vector.shape_cast %197 : vector<16x16xf32> to vector<1x1x16x16xf32>
    tpu.vector_store %arg12[%c0_95, %c1_96, %c0_97, %c0_98], %200 {strides = array<i32>} : memref<1x2x16x16xf32, #tpu.memory_space<vmem>>, vector<1x1x16x16xf32>,
    return
  }
  func.func @transform_0(%arg0: i32) -> (i32, i32, i32, i32) {
    %c0_i32 = arith.constant 0 : i32
    %c0_i32_0 = arith.constant 0 : i32
    %c0_i32_1 = arith.constant 0 : i32
    %c0_i32_2 = arith.constant 0 : i32
    return %arg0, %c0_i32, %c0_i32_0, %c0_i32_1 : i32, i32, i32, i32
  }
  func.func @transform_1(%arg0: i32) -> (i32, i32, i32, i32) {
    %c0_i32 = arith.constant 0 : i32
    %c0_i32_0 = arith.constant 0 : i32
    %c0_i32_1 = arith.constant 0 : i32
    %c0_i32_2 = arith.constant 0 : i32
    return %arg0, %c0_i32, %c0_i32_0, %c0_i32_1 : i32, i32, i32, i32
  }
  func.func @transform_2(%arg0: i32) -> (i32, i32, i32, i32) {
    %c0_i32 = arith.constant 0 : i32
    %c0_i32_0 = arith.constant 0 : i32
    %c0_i32_1 = arith.constant 0 : i32
    %c0_i32_2 = arith.constant 0 : i32
    return %arg0, %c0_i32, %c0_i32_0, %c0_i32_1 : i32, i32, i32, i32
  }
  func.func @transform_3(%arg0: i32) -> (i32, i32, i32, i32) {
    %c0_i32 = arith.constant 0 : i32
    %c0_i32_0 = arith.constant 0 : i32
    %c0_i32_1 = arith.constant 0 : i32
    %c0_i32_2 = arith.constant 0 : i32
    return %arg0, %c0_i32, %c0_i32_0, %c0_i32_1 : i32, i32, i32, i32
  }
  func.func @transform_4(%arg0: i32) -> (i32, i32, i32, i32) {
    %c0_i32 = arith.constant 0 : i32
    %c0_i32_0 = arith.constant 0 : i32
    %c0_i32_1 = arith.constant 0 : i32
    %c0_i32_2 = arith.constant 0 : i32
    return %arg0, %c0_i32, %c0_i32_0, %c0_i32_1 : i32, i32, i32, i32
  }
  func.func @transform_5(%arg0: i32) -> (i32, i32, i32) {
    %c0_i32 = arith.constant 0 : i32
    %c0_i32_0 = arith.constant 0 : i32
    %c0_i32_1 = arith.constant 0 : i32
    return %arg0, %c0_i32, %c0_i32_0 : i32, i32, i32
  }
  func.func @transform_6(%arg0: i32) -> (i32, i32, i32) {
    %c0_i32 = arith.constant 0 : i32
    %c0_i32_0 = arith.constant 0 : i32
    %c0_i32_1 = arith.constant 0 : i32
    return %arg0, %c0_i32, %c0_i32_0 : i32, i32, i32
  }
  func.func @transform_7(%arg0: i32) -> (i32, i32) {
    %c0_i32 = arith.constant 0 : i32
    %c0_i32_0 = arith.constant 0 : i32
    %c0_i32_1 = arith.constant 0 : i32
    return %c0_i32, %c0_i32_0 : i32, i32
  }
  func.func @transform_8(%arg0: i32) -> (i32, i32) {
    %c0_i32 = arith.constant 0 : i32
    %c0_i32_0 = arith.constant 0 : i32
    %c0_i32_1 = arith.constant 0 : i32
    return %c0_i32, %c0_i32_0 : i32, i32
  }
  func.func @transform_9(%arg0: i32) -> (i32, i32) {
    %c0_i32 = arith.constant 0 : i32
    %c0_i32_0 = arith.constant 0 : i32
    %c0_i32_1 = arith.constant 0 : i32
    return %c0_i32, %c0_i32_0 : i32, i32
  }
  func.func @transform_10(%arg0: i32) -> (i32, i32) {
    %c0_i32 = arith.constant 0 : i32
    %c0_i32_0 = arith.constant 0 : i32
    %c0_i32_1 = arith.constant 0 : i32
    return %c0_i32, %c0_i32_0 : i32, i32
  }
  func.func @transform_11(%arg0: i32) -> (i32, i32, i32, i32) {
    %c0_i32 = arith.constant 0 : i32
    %c0_i32_0 = arith.constant 0 : i32
    %c0_i32_1 = arith.constant 0 : i32
    %c0_i32_2 = arith.constant 0 : i32
    return %arg0, %c0_i32, %c0_i32_0, %c0_i32_1 : i32, i32, i32, i32
  }
}

</mosaic_0001>

<llo_original>
// kernel: tpu_custom_call.1
$region0: #{tpu_custom_call.1}
  #allocation0 [shape = 'u32[]', space=smem, size = 0x4, offset = 0x4, fixed_abs, tag = 'smem constant byte address 0x4 - core index']
  #allocation1 [shape = 'u32[144,128]{1,0:T(1,128)}', space=vmem, size = 0x12000, scoped, tag = 'internal scratch']
  %s0 = inlined_call_operand.vmem [shape: f32[2,2,16,16], index: 0, kind: input, shape index: {}]
  %s1 = inlined_call_operand.vmem [shape: f32[2,2,4,16], index: 1, kind: input, shape index: {}]
  %s2 = inlined_call_operand.vmem [shape: f32[2,2,4,16], index: 2, kind: input, shape index: {}]
  %s3 = inlined_call_operand.vmem [shape: f32[2,2,16,4], index: 3, kind: input, shape index: {}]
  %s4 = inlined_call_operand.vmem [shape: f32[2,2,16,4], index: 4, kind: input, shape index: {}]
  %s5 = inlined_call_operand.vmem [shape: f32[2,16,1], index: 5, kind: input, shape index: {}]
  %s6 = inlined_call_operand.vmem [shape: f32[2,4,1], index: 6, kind: input, shape index: {}]
  %s7 = inlined_call_operand.vmem [shape: f32[1,32], index: 7, kind: input, shape index: {}]
  %s8 = inlined_call_operand.vmem [shape: f32[1,32], index: 8, kind: input, shape index: {}]
  %s9 = inlined_call_operand.vmem [shape: f32[1,32], index: 9, kind: input, shape index: {}]
  %s10 = inlined_call_operand.vmem [shape: f32[1,32], index: 10, kind: input, shape index: {}]
  %s11 = inlined_call_operand.hbm [shape: f32[2,2,16,16], index: 11, kind: output, shape index: {}]
  %s12 = sld [smem:[#allocation0]]
  $region77: #{tpu_custom_call.1} parent=0
    _
  %s14 = ssub.s32 1, %s12
  %s15 = scalar_select 0, %s14, %s12
  $region1: #{tpu_custom_call.1} parent=0
    #allocation2 [shape = 'u8[32768]{0}', space=vmem, size = 0x8000, scoped, tag = 'output window, operand 0']
    #allocation3 [shape = 's32[2]{0}', space=sflag, size = 0x8, scoped, tag = 'scoped memory for tpu_custom_call.1']
    %16 = vsyncpa [#allocation3], 0
    %s17 = scalar_lea.sflag [#allocation3], 1
    %18 = vsyncpa %s17, 0
    loop: start=0, step=1, limit=4
    $region2: #{tpu_custom_call.1} parent=1 // loop_pre_header
      _
    $region3: #{tpu_custom_call.1} parent=1 // loop_header
      %s20 = sphi 0, %s24
      %p21 = scmp.ge.s32.totalorder %s20, 4
      %s30 = sphi 0, %s32
      %s33 = sphi 0, %s30
      %s34 = sphi 0, %s33
      %s50 = sphi 0, %s34
      %s56 = sphi 0, %s58
      %s59 = sphi 0, %s56
      %s60 = sphi 0, %s59
      %s76 = sphi 0, %s60
      %s82 = sphi 0, %s84
      %s85 = sphi 0, %s82
      %s86 = sphi 0, %s85
      %s102 = sphi 0, %s86
      %s108 = sphi 0, %s110
      %s111 = sphi 0, %s108
      %s112 = sphi 0, %s111
      %s128 = sphi 0, %s112
      %s134 = sphi 0, %s136
      %s137 = sphi 0, %s134
      %s138 = sphi 0, %s137
      %s154 = sphi 0, %s138
      %s160 = sphi 0, %s162
      %s163 = sphi 0, %s160
      %s164 = sphi 0, %s163
      %s180 = sphi 0, %s164
      %s186 = sphi 0, %s188
      %s189 = sphi 0, %s186
      %s190 = sphi 0, %s189
      %s206 = sphi 0, %s190
      %s210 = sphi 0, %s210
      %s212 = sphi 0, %s210
      %s213 = sphi 0, %s212
      %s227 = sphi 0, %s213
      %s231 = sphi 0, %s231
      %s233 = sphi 0, %s231
      %s234 = sphi 0, %s233
      %s248 = sphi 0, %s234
      %s252 = sphi 0, %s252
      %s254 = sphi 0, %s252
      %s255 = sphi 0, %s254
      %s269 = sphi 0, %s255
      %s273 = sphi 0, %s273
      %s275 = sphi 0, %s273
      %s276 = sphi 0, %s275
      %s290 = sphi 0, %s276
      %s296 = sphi 0, %s298
      %s299 = sphi 0, %s296
      %s300 = sphi 0, %s299
      %s316 = sphi 0, %s300
    $region4: #{tpu_custom_call.1} parent=1 // loop_header_branch
      %23 = sbr.rel (%p21) target = $region8
    $region5: #{tpu_custom_call.1} parent=1 // loop_body
      %s25 = ssub.s32 %s20, 1
      %s26 = ssub.s32 %s20, 2
      %s27 = sadd.s32 %s20, 1
      %s28 = ssub.s32 %s20, %s27
      %p29 = scmp.eq.s32.totalorder %s28, 0
      %s31 = sadd.s32 %s30, 1
      %s32 = scalar_select %p29, %s30, %s31
      %p35 = pneg %p29
      %p36 = scmp.eq.s32.totalorder %s20, 1
      %p37 = por %p35, %p36
      %p38 = scmp.ne.s32.totalorder %s30, %s33
      %p39 = scmp.eq.s32.totalorder %s20, 0
      %p40 = por %p38, %p39
      %p41 = scmp.ne.s32.totalorder %s30, %s33
      %p42 = scmp.eq.s32.totalorder %s25, 1
      %p43 = por %p41, %p42
      %p44 = scmp.ne.s32.totalorder %s33, %s34
      %p45 = scmp.eq.s32.totalorder %s25, 0
      %p46 = por %p44, %p45
      %p47 = scmp.ne.s32.totalorder %s33, %s34
      %p48 = scmp.eq.s32.totalorder %s26, 1
      %p49 = por %p47, %p48
      %p51 = scmp.ne.s32.totalorder %s34, %s50
      %p52 = scmp.eq.s32.totalorder %s26, 0
      %p53 = por %p51, %p52
      %s54 = ssub.s32 %s20, %s27
      %p55 = scmp.eq.s32.totalorder %s54, 0
      %s57 = sadd.s32 %s56, 1
      %s58 = scalar_select %p55, %s56, %s57
      %p61 = pneg %p55
      %p62 = scmp.eq.s32.totalorder %s20, 1
      %p63 = por %p61, %p62
      %p64 = scmp.ne.s32.totalorder %s56, %s59
      %p65 = scmp.eq.s32.totalorder %s20, 0
      %p66 = por %p64, %p65
      %p67 = scmp.ne.s32.totalorder %s56, %s59
      %p68 = scmp.eq.s32.totalorder %s25, 1
      %p69 = por %p67, %p68
      %p70 = scmp.ne.s32.totalorder %s59, %s60
      %p71 = scmp.eq.s32.totalorder %s25, 0
      %p72 = por %p70, %p71
      %p73 = scmp.ne.s32.totalorder %s59, %s60
      %p74 = scmp.eq.s32.totalorder %s26, 1
      %p75 = por %p73, %p74
      %p77 = scmp.ne.s32.totalorder %s60, %s76
      %p78 = scmp.eq.s32.totalorder %s26, 0
      %p79 = por %p77, %p78
      %s80 = ssub.s32 %s20, %s27
      %p81 = scmp.eq.s32.totalorder %s80, 0
      %s83 = sadd.s32 %s82, 1
      %s84 = scalar_select %p81, %s82, %s83
      %p87 = pneg %p81
      %p88 = scmp.eq.s32.totalorder %s20, 1
      %p89 = por %p87, %p88
      %p90 = scmp.ne.s32.totalorder %s82, %s85
      %p91 = scmp.eq.s32.totalorder %s20, 0
      %p92 = por %p90, %p91
      %p93 = scmp.ne.s32.totalorder %s82, %s85
      %p94 = scmp.eq.s32.totalorder %s25, 1
      %p95 = por %p93, %p94
      %p96 = scmp.ne.s32.totalorder %s85, %s86
      %p97 = scmp.eq.s32.totalorder %s25, 0
      %p98 = por %p96, %p97
      %p99 = scmp.ne.s32.totalorder %s85, %s86
      %p100 = scmp.eq.s32.totalorder %s26, 1
      %p101 = por %p99, %p100
      %p103 = scmp.ne.s32.totalorder %s86, %s102
      %p104 = scmp.eq.s32.totalorder %s26, 0
      %p105 = por %p103, %p104
      %s106 = ssub.s32 %s20, %s27
      %p107 = scmp.eq.s32.totalorder %s106, 0
      %s109 = sadd.s32 %s108, 1
      %s110 = scalar_select %p107, %s108, %s109
      %p113 = pneg %p107
      %p114 = scmp.eq.s32.totalorder %s20, 1
      %p115 = por %p113, %p114
      %p116 = scmp.ne.s32.totalorder %s108, %s111
      %p117 = scmp.eq.s32.totalorder %s20, 0
      %p118 = por %p116, %p117
      %p119 = scmp.ne.s32.totalorder %s108, %s111
      %p120 = scmp.eq.s32.totalorder %s25, 1
      %p121 = por %p119, %p120
      %p122 = scmp.ne.s32.totalorder %s111, %s112
      %p123 = scmp.eq.s32.totalorder %s25, 0
      %p124 = por %p122, %p123
      %p125 = scmp.ne.s32.totalorder %s111, %s112
      %p126 = scmp.eq.s32.totalorder %s26, 1
      %p127 = por %p125, %p126
      %p129 = scmp.ne.s32.totalorder %s112, %s128
      %p130 = scmp.eq.s32.totalorder %s26, 0
      %p131 = por %p129, %p130
      %s132 = ssub.s32 %s20, %s27
      %p133 = scmp.eq.s32.totalorder %s132, 0
      %s135 = sadd.s32 %s134, 1
      %s136 = scalar_select %p133, %s134, %s135
      %p139 = pneg %p133
      %p140 = scmp.eq.s32.totalorder %s20, 1
      %p141 = por %p139, %p140
      %p142 = scmp.ne.s32.totalorder %s134, %s137
      %p143 = scmp.eq.s32.totalorder %s20, 0
      %p144 = por %p142, %p143
      %p145 = scmp.ne.s32.totalorder %s134, %s137
      %p146 = scmp.eq.s32.totalorder %s25, 1
      %p147 = por %p145, %p146
      %p148 = scmp.ne.s32.totalorder %s137, %s138
      %p149 = scmp.eq.s32.totalorder %s25, 0
      %p150 = por %p148, %p149
      %p151 = scmp.ne.s32.totalorder %s137, %s138
      %p152 = scmp.eq.s32.totalorder %s26, 1
      %p153 = por %p151, %p152
      %p155 = scmp.ne.s32.totalorder %s138, %s154
      %p156 = scmp.eq.s32.totalorder %s26, 0
      %p157 = por %p155, %p156
      %s158 = ssub.s32 %s20, %s27
      %p159 = scmp.eq.s32.totalorder %s158, 0
      %s161 = sadd.s32 %s160, 1
      %s162 = scalar_select %p159, %s160, %s161
      %p165 = pneg %p159
      %p166 = scmp.eq.s32.totalorder %s20, 1
      %p167 = por %p165, %p166
      %p168 = scmp.ne.s32.totalorder %s160, %s163
      %p169 = scmp.eq.s32.totalorder %s20, 0
      %p170 = por %p168, %p169
      %p171 = scmp.ne.s32.totalorder %s160, %s163
      %p172 = scmp.eq.s32.totalorder %s25, 1
      %p173 = por %p171, %p172
      %p174 = scmp.ne.s32.totalorder %s163, %s164
      %p175 = scmp.eq.s32.totalorder %s25, 0
      %p176 = por %p174, %p175
      %p177 = scmp.ne.s32.totalorder %s163, %s164
      %p178 = scmp.eq.s32.totalorder %s26, 1
      %p179 = por %p177, %p178
      %p181 = scmp.ne.s32.totalorder %s164, %s180
      %p182 = scmp.eq.s32.totalorder %s26, 0
      %p183 = por %p181, %p182
      %s184 = ssub.s32 %s20, %s27
      %p185 = scmp.eq.s32.totalorder %s184, 0
      %s187 = sadd.s32 %s186, 1
      %s188 = scalar_select %p185, %s186, %s187
      %p191 = pneg %p185
      %p192 = scmp.eq.s32.totalorder %s20, 1
      %p193 = por %p191, %p192
      %p194 = scmp.ne.s32.totalorder %s186, %s189
      %p195 = scmp.eq.s32.totalorder %s20, 0
      %p196 = por %p194, %p195
      %p197 = scmp.ne.s32.totalorder %s186, %s189
      %p198 = scmp.eq.s32.totalorder %s25, 1
      %p199 = por %p197, %p198
      %p200 = scmp.ne.s32.totalorder %s189, %s190
      %p201 = scmp.eq.s32.totalorder %s25, 0
      %p202 = por %p200, %p201
      %p203 = scmp.ne.s32.totalorder %s189, %s190
      %p204 = scmp.eq.s32.totalorder %s26, 1
      %p205 = por %p203, %p204
      %p207 = scmp.ne.s32.totalorder %s190, %s206
      %p208 = scmp.eq.s32.totalorder %s26, 0
      %p209 = por %p207, %p208
      %s211 = sadd.s32 %s210, 1
      %p214 = scmp.eq.s32.totalorder %s20, 1
      %p215 = scmp.ne.s32.totalorder %s210, %s212
      %p216 = scmp.eq.s32.totalorder %s20, 0
      %p217 = por %p215, %p216
      %p218 = scmp.ne.s32.totalorder %s210, %s212
      %p219 = scmp.eq.s32.totalorder %s25, 1
      %p220 = por %p218, %p219
      %p221 = scmp.ne.s32.totalorder %s212, %s213
      %p222 = scmp.eq.s32.totalorder %s25, 0
      %p223 = por %p221, %p222
      %p224 = scmp.ne.s32.totalorder %s212, %s213
      %p225 = scmp.eq.s32.totalorder %s26, 1
      %p226 = por %p224, %p225
      %p228 = scmp.ne.s32.totalorder %s213, %s227
      %p229 = scmp.eq.s32.totalorder %s26, 0
      %p230 = por %p228, %p229
      %s232 = sadd.s32 %s231, 1
      %p235 = scmp.eq.s32.totalorder %s20, 1
      %p236 = scmp.ne.s32.totalorder %s231, %s233
      %p237 = scmp.eq.s32.totalorder %s20, 0
      %p238 = por %p236, %p237
      %p239 = scmp.ne.s32.totalorder %s231, %s233
      %p240 = scmp.eq.s32.totalorder %s25, 1
      %p241 = por %p239, %p240
      %p242 = scmp.ne.s32.totalorder %s233, %s234
      %p243 = scmp.eq.s32.totalorder %s25, 0
      %p244 = por %p242, %p243
      %p245 = scmp.ne.s32.totalorder %s233, %s234
      %p246 = scmp.eq.s32.totalorder %s26, 1
      %p247 = por %p245, %p246
      %p249 = scmp.ne.s32.totalorder %s234, %s248
      %p250 = scmp.eq.s32.totalorder %s26, 0
      %p251 = por %p249, %p250
      %s253 = sadd.s32 %s252, 1
      %p256 = scmp.eq.s32.totalorder %s20, 1
      %p257 = scmp.ne.s32.totalorder %s252, %s254
      %p258 = scmp.eq.s32.totalorder %s20, 0
      %p259 = por %p257, %p258
      %p260 = scmp.ne.s32.totalorder %s252, %s254
      %p261 = scmp.eq.s32.totalorder %s25, 1
      %p262 = por %p260, %p261
      %p263 = scmp.ne.s32.totalorder %s254, %s255
      %p264 = scmp.eq.s32.totalorder %s25, 0
      %p265 = por %p263, %p264
      %p266 = scmp.ne.s32.totalorder %s254, %s255
      %p267 = scmp.eq.s32.totalorder %s26, 1
      %p268 = por %p266, %p267
      %p270 = scmp.ne.s32.totalorder %s255, %s269
      %p271 = scmp.eq.s32.totalorder %s26, 0
      %p272 = por %p270, %p271
      %s274 = sadd.s32 %s273, 1
      %p277 = scmp.eq.s32.totalorder %s20, 1
      %p278 = scmp.ne.s32.totalorder %s273, %s275
      %p279 = scmp.eq.s32.totalorder %s20, 0
      %p280 = por %p278, %p279
      %p281 = scmp.ne.s32.totalorder %s273, %s275
      %p282 = scmp.eq.s32.totalorder %s25, 1
      %p283 = por %p281, %p282
      %p284 = scmp.ne.s32.totalorder %s275, %s276
      %p285 = scmp.eq.s32.totalorder %s25, 0
      %p286 = por %p284, %p285
      %p287 = scmp.ne.s32.totalorder %s275, %s276
      %p288 = scmp.eq.s32.totalorder %s26, 1
      %p289 = por %p287, %p288
      %p291 = scmp.ne.s32.totalorder %s276, %s290
      %p292 = scmp.eq.s32.totalorder %s26, 0
      %p293 = por %p291, %p292
      %s294 = ssub.s32 %s20, %s27
      %p295 = scmp.eq.s32.totalorder %s294, 0
      %s297 = sadd.s32 %s296, 1
      %s298 = scalar_select %p295, %s296, %s297
      %p301 = pneg %p295
      %p302 = scmp.eq.s32.totalorder %s20, 1
      %p303 = por %p301, %p302
      %p304 = scmp.ne.s32.totalorder %s296, %s299
      %p305 = scmp.eq.s32.totalorder %s20, 0
      %p306 = por %p304, %p305
      %p307 = scmp.ne.s32.totalorder %s296, %s299
      %p308 = scmp.eq.s32.totalorder %s25, 1
      %p309 = por %p307, %p308
      %p310 = scmp.ne.s32.totalorder %s299, %s300
      %p311 = scmp.eq.s32.totalorder %s25, 0
      %p312 = por %p310, %p311
      %p313 = scmp.ne.s32.totalorder %s299, %s300
      %p314 = scmp.eq.s32.totalorder %s26, 1
      %p315 = por %p313, %p314
      %p317 = scmp.ne.s32.totalorder %s300, %s316
      %p318 = scmp.eq.s32.totalorder %s26, 0
      %p319 = por %p317, %p318
      %p320 = scmp.le.s32.totalorder 1, %s20
      %p321 = scmp.lt.s32.totalorder %s20, 3
      %p322 = pnand %p320, %p321
      %p323 = pneg %p322
      // Predicated region
      $region9: #{tpu_custom_call.1} parent=5 // pred_check
        _
      $region10: #{tpu_custom_call.1} parent=5 // pred_check_branch
        %325 = sbr.rel (%p322) target = $region12
      $region11: #{tpu_custom_call.1} parent=5 // pred_region
        %s326 = ssub.s32 %s20, 1
        // Predicated region
        $region13: #{tpu_custom_call.1} parent=11 // pred_check
          %p327 = pneg %p223
        $region14: #{tpu_custom_call.1} parent=11 // pred_check_branch
          %329 = sbr.rel (%p327) target = $region16
        $region15: #{tpu_custom_call.1} parent=11 // pred_region
          _
        $region16: #{tpu_custom_call.1} parent=11 // pred_fallthru
          _
        // Predicated region
        $region17: #{tpu_custom_call.1} parent=11 // pred_check
          %p330 = pneg %p244
        $region18: #{tpu_custom_call.1} parent=11 // pred_check_branch
          %332 = sbr.rel (%p330) target = $region20
        $region19: #{tpu_custom_call.1} parent=11 // pred_region
          _
        $region20: #{tpu_custom_call.1} parent=11 // pred_fallthru
          _
        // Predicated region
        $region21: #{tpu_custom_call.1} parent=11 // pred_check
          %p333 = pneg %p265
        $region22: #{tpu_custom_call.1} parent=11 // pred_check_branch
          %335 = sbr.rel (%p333) target = $region24
        $region23: #{tpu_custom_call.1} parent=11 // pred_region
          _
        $region24: #{tpu_custom_call.1} parent=11 // pred_fallthru
          _
        // Predicated region
        $region25: #{tpu_custom_call.1} parent=11 // pred_check
          %p336 = pneg %p286
        $region26: #{tpu_custom_call.1} parent=11 // pred_check_branch
          %338 = sbr.rel (%p336) target = $region28
        $region27: #{tpu_custom_call.1} parent=11 // pred_region
          _
        $region28: #{tpu_custom_call.1} parent=11 // pred_fallthru
          _
      $region12: #{tpu_custom_call.1} parent=5 // pred_fallthru
        _
      %p339 = scmp.lt.s32.totalorder %s20, 2
      // Predicated region
      $region29: #{tpu_custom_call.1} parent=5 // pred_check
        %p340 = pneg %p339
      $region30: #{tpu_custom_call.1} parent=5 // pred_check_branch
        %342 = sbr.rel (%p340) target = $region32
      $region31: #{tpu_custom_call.1} parent=5 // pred_region
        // Predicated region
        $region33: #{tpu_custom_call.1} parent=31 // pred_check
          %p343 = pneg %p40
        $region34: #{tpu_custom_call.1} parent=31 // pred_check_branch
          %345 = sbr.rel (%p343) target = $region36
        $region35: #{tpu_custom_call.1} parent=31 // pred_region
          %p346 = scmp.lt.s32.totalorder %s20, 1
          %s347 = scalar_select %p346, %s20, 1
          %s348 = smul.addr %s347, 4
          %s349 = smul.addr %s348, 8
          %s350 = scalar_lea.vmem %s0, %s349
        $region36: #{tpu_custom_call.1} parent=31 // pred_fallthru
          _
        // Predicated region
        $region37: #{tpu_custom_call.1} parent=31 // pred_check
          %p351 = pneg %p66
        $region38: #{tpu_custom_call.1} parent=31 // pred_check_branch
          %353 = sbr.rel (%p351) target = $region40
        $region39: #{tpu_custom_call.1} parent=31 // pred_region
          %p354 = scmp.lt.s32.totalorder %s20, 1
          %s355 = scalar_select %p354, %s20, 1
          %s356 = smul.addr %s355, 2
          %s357 = smul.addr %s356, 4
          %s358 = scalar_lea.vmem %s1, %s357
        $region40: #{tpu_custom_call.1} parent=31 // pred_fallthru
          _
        // Predicated region
        $region41: #{tpu_custom_call.1} parent=31 // pred_check
          %p359 = pneg %p92
        $region42: #{tpu_custom_call.1} parent=31 // pred_check_branch
          %361 = sbr.rel (%p359) target = $region44
        $region43: #{tpu_custom_call.1} parent=31 // pred_region
          %p362 = scmp.lt.s32.totalorder %s20, 1
          %s363 = scalar_select %p362, %s20, 1
          %s364 = smul.addr %s363, 2
          %s365 = smul.addr %s364, 4
          %s366 = scalar_lea.vmem %s2, %s365
        $region44: #{tpu_custom_call.1} parent=31 // pred_fallthru
          _
        // Predicated region
        $region45: #{tpu_custom_call.1} parent=31 // pred_check
          %p367 = pneg %p118
        $region46: #{tpu_custom_call.1} parent=31 // pred_check_branch
          %369 = sbr.rel (%p367) target = $region48
        $region47: #{tpu_custom_call.1} parent=31 // pred_region
          %p370 = scmp.lt.s32.totalorder %s20, 1
          %s371 = scalar_select %p370, %s20, 1
          %s372 = smul.addr %s371, 4
          %s373 = smul.addr %s372, 8
          %s374 = scalar_lea.vmem %s3, %s373
        $region48: #{tpu_custom_call.1} parent=31 // pred_fallthru
          _
        // Predicated region
        $region49: #{tpu_custom_call.1} parent=31 // pred_check
          %p375 = pneg %p144
        $region50: #{tpu_custom_call.1} parent=31 // pred_check_branch
          %377 = sbr.rel (%p375) target = $region52
        $region51: #{tpu_custom_call.1} parent=31 // pred_region
          %p378 = scmp.lt.s32.totalorder %s20, 1
          %s379 = scalar_select %p378, %s20, 1
          %s380 = smul.addr %s379, 4
          %s381 = smul.addr %s380, 8
          %s382 = scalar_lea.vmem %s4, %s381
        $region52: #{tpu_custom_call.1} parent=31 // pred_fallthru
          _
        // Predicated region
        $region53: #{tpu_custom_call.1} parent=31 // pred_check
          %p383 = pneg %p170
        $region54: #{tpu_custom_call.1} parent=31 // pred_check_branch
          %385 = sbr.rel (%p383) target = $region56
        $region55: #{tpu_custom_call.1} parent=31 // pred_region
          %p386 = scmp.lt.s32.totalorder %s20, 1
          %s387 = scalar_select %p386, %s20, 1
          %s388 = smul.addr %s387, 2
          %s389 = smul.addr %s388, 8
          %s390 = scalar_lea.vmem %s5, %s389
        $region56: #{tpu_custom_call.1} parent=31 // pred_fallthru
          _
        // Predicated region
        $region57: #{tpu_custom_call.1} parent=31 // pred_check
          %p391 = pneg %p196
        $region58: #{tpu_custom_call.1} parent=31 // pred_check_branch
          %393 = sbr.rel (%p391) target = $region60
        $region59: #{tpu_custom_call.1} parent=31 // pred_region
          %p394 = scmp.lt.s32.totalorder %s20, 1
          %s395 = scalar_select %p394, %s20, 1
          %s396 = smul.addr %s395, 4
          %s397 = scalar_lea.vmem %s6, %s396
        $region60: #{tpu_custom_call.1} parent=31 // pred_fallthru
          _
      $region32: #{tpu_custom_call.1} parent=5 // pred_fallthru
        _
      %p398 = scmp.le.s32.totalorder 1, %s20
      %p399 = scmp.lt.s32.totalorder %s20, 3
      %p400 = pnand %p398, %p399
      %p401 = pneg %p400
      // Predicated region
      $region61: #{tpu_custom_call.1} parent=5 // pred_check
        _
      $region62: #{tpu_custom_call.1} parent=5 // pred_check_branch
        %403 = sbr.rel (%p400) target = $region64
      $region63: #{tpu_custom_call.1} parent=5 // pred_region
        %s404 = ssub.s32 %s20, 1
        %p405 = scmp.lt.s32.totalorder %s25, 1
        %s406 = scalar_select %p405, %s25, 1
        %s407 = smul.addr %s406, 4
        %s408 = smul.addr %s407, 8
        %s409 = scalar_lea.vmem %s0, %s408
        %p410 = pneg %p46
        %p411 = pneg %p43
        %p412 = scmp.lt.s32.totalorder %s25, 1
        %s413 = scalar_select %p412, %s25, 1
        %s414 = smul.addr %s413, 2
        %s415 = smul.addr %s414, 4
        %s416 = scalar_lea.vmem %s1, %s415
        %p417 = pneg %p72
        %p418 = pneg %p69
        %p419 = scmp.lt.s32.totalorder %s25, 1
        %s420 = scalar_select %p419, %s25, 1
        %s421 = smul.addr %s420, 2
        %s422 = smul.addr %s421, 4
        %s423 = scalar_lea.vmem %s2, %s422
        %p424 = pneg %p98
        %p425 = pneg %p95
        %p426 = scmp.lt.s32.totalorder %s25, 1
        %s427 = scalar_select %p426, %s25, 1
        %s428 = smul.addr %s427, 4
        %s429 = smul.addr %s428, 8
        %s430 = scalar_lea.vmem %s3, %s429
        %p431 = pneg %p124
        %p432 = pneg %p121
        %p433 = scmp.lt.s32.totalorder %s25, 1
        %s434 = scalar_select %p433, %s25, 1
        %s435 = smul.addr %s434, 4
        %s436 = smul.addr %s435, 8
        %s437 = scalar_lea.vmem %s4, %s436
        %p438 = pneg %p150
        %p439 = pneg %p147
        %p440 = scmp.lt.s32.totalorder %s25, 1
        %s441 = scalar_select %p440, %s25, 1
        %s442 = smul.addr %s441, 2
        %s443 = smul.addr %s442, 8
        %s444 = scalar_lea.vmem %s5, %s443
        %p445 = pneg %p176
        %p446 = pneg %p173
        %p447 = scmp.lt.s32.totalorder %s25, 1
        %s448 = scalar_select %p447, %s25, 1
        %s449 = smul.addr %s448, 4
        %s450 = scalar_lea.vmem %s6, %s449
        %p451 = pneg %p202
        %p452 = pneg %p199
        %p453 = pneg %p223
        %p454 = pneg %p220
        %p455 = pneg %p244
        %p456 = pneg %p241
        %p457 = pneg %p265
        %p458 = pneg %p262
        %p459 = pneg %p286
        %p460 = pneg %p283
        %p461 = pneg %p312
        %p462 = pneg %p309
        %s463 = sand.u32 %s299, 1
        %s464 = scalar_lea.sflag [#allocation3], %s463
        %s465 = sand.u32 %s299, 1
        %s466 = smul.addr %s465, 32
        %s467 = scalar_lea.vmem [#allocation2], %s466
        %p468 = scmp.lt.s32.totalorder %s25, 1
        %s469 = scalar_select %p468, %s25, 1
        %s470 = smul.addr %s469, 4
        %s471 = smul.addr %s470, 8
        %s472 = scalar_lea.vmem %s0, %s471
        %p473 = scmp.lt.s32.totalorder %s25, 1
        %s474 = scalar_select %p473, %s25, 1
        %s475 = smul.addr %s474, 2
        %s476 = smul.addr %s475, 4
        %s477 = scalar_lea.vmem %s1, %s476
        %p478 = scmp.lt.s32.totalorder %s25, 1
        %s479 = scalar_select %p478, %s25, 1
        %s480 = smul.addr %s479, 2
        %s481 = smul.addr %s480, 4
        %s482 = scalar_lea.vmem %s2, %s481
        %p483 = scmp.lt.s32.totalorder %s25, 1
        %s484 = scalar_select %p483, %s25, 1
        %s485 = smul.addr %s484, 4
        %s486 = smul.addr %s485, 8
        %s487 = scalar_lea.vmem %s3, %s486
        %p488 = scmp.lt.s32.totalorder %s25, 1
        %s489 = scalar_select %p488, %s25, 1
        %s490 = smul.addr %s489, 4
        %s491 = smul.addr %s490, 8
        %s492 = scalar_lea.vmem %s4, %s491
        %p493 = scmp.lt.s32.totalorder %s25, 1
        %s494 = scalar_select %p493, %s25, 1
        %s495 = smul.addr %s494, 2
        %s496 = smul.addr %s495, 8
        %s497 = scalar_lea.vmem %s5, %s496
        %p498 = scmp.lt.s32.totalorder %s25, 1
        %s499 = scalar_select %p498, %s25, 1
        %s500 = smul.addr %s499, 4
        %s501 = scalar_lea.vmem %s6, %s500
        %v503 = vld [vmem:[%s497] sm:$0xff]
        %v504 = vld [vmem:[%s497 + $0x8] sm:$0xff]
        %v505 = vld [vmem:[%s501] sm:$0xf]
        %v506 = vmul.f32 %v505, 0.25
        %v507 = vmul.f32 %v503, 0.25
        %v508 = vmul.f32 %v504, 0.25
        %v509 = vld [vmem:[%s472] sm:$0xff]
        %v510 = vld [vmem:[%s472 + $0x8] sm:$0xff]
        %v511 = vpack.c.bf16 %v510, %v509
        %v512 = vld [vmem:[%s477] sm:$0xf]
        %514 = vset.pattern.permute.xlu0 0
        %515 = vperm.xlu0 %514, %v506
        %v516 = vpop.permute.xlu0 %515
        %v518 = vmul.f32 %v512, %v516
        %v519 = vpack.c.bf16 %v518, %v518
        %v520 = vld [vmem:[%s482] sm:$0xf]
        %522 = vset.pattern.permute.xlu0 0
        %523 = vperm.xlu0 %522, %v505
        %v524 = vpop.permute.xlu0 %523
        %v526 = vmul.f32 %v520, %v524
        %v527 = vpack.c.bf16 %v526, %v526
        %vm528 = vcmask 130048
        %v530 = vsel %vm528, %v511, 0
        %v533 = vsel %vm528, %v519, 0
        %535 = vmatprep.subr.bf16.mxu0 0
        %536 = vmatpush1.bf16.xpose.msra.mxu0 %v533
        %537 = vmatprep.subr.bf16.mxu0 0
        %538 = vmatpush1.bf16.xpose.msra.mxu0 0
        %539 = vmatprep.subr.bf16.mxu0 0
        %540 = vmatpush1.bf16.xpose.msra.mxu0 0
        %541 = vmatprep.subr.bf16.mxu0 0
        %542 = vmatpush1.bf16.xpose.msra.mxu0 0
        %543 = vmatprep.subr.bf16.mxu0 0
        %544 = vmatpush1.bf16.xpose.msra.mxu0 0
        %545 = vmatprep.subr.bf16.mxu0 0
        %546 = vmatpush1.bf16.xpose.msra.mxu0 0
        %547 = vmatprep.subr.bf16.mxu0 0
        %548 = vmatpush1.bf16.xpose.msra.mxu0 0
        %549 = vmatprep.subr.bf16.mxu0 0
        %550 = vmatpush1.bf16.xpose.msra.mxu0 0
        %551 = vmatprep.subr.bf16.mxu0 0
        %552 = vmatpush1.bf16.xpose.msra.mxu0 0
        %553 = vmatprep.subr.bf16.mxu0 0
        %554 = vmatpush1.bf16.xpose.msra.mxu0 0
        %555 = vmatprep.subr.bf16.mxu0 0
        %556 = vmatpush1.bf16.xpose.msra.mxu0 0
        %557 = vmatprep.subr.bf16.mxu0 0
        %558 = vmatpush1.bf16.xpose.msra.mxu0 0
        %559 = vmatprep.subr.bf16.mxu0 0
        %560 = vmatpush1.bf16.xpose.msra.mxu0 0
        %561 = vmatprep.subr.bf16.mxu0 0
        %562 = vmatpush1.bf16.xpose.msra.mxu0 0
        %563 = vmatprep.subr.bf16.mxu0 0
        %564 = vmatpush1.bf16.xpose.msra.mxu0 0
        %565 = vmatprep.subr.bf16.mxu0 0
        %566 = vmatpush1.bf16.xpose.msra.mxu0 0
        %567 = vmatprep.mubr.bf16.mxu0 0
        %568 = vmatmul.mubr.bf16.gmra.mrb[0].mxu0 %v530
        %v569 = vpop.f32.mrb[0].mxu0
        %v570 = vadd.f32 0.0, %v569
        %v571 = vpop.f32.mrb[0].mxu0
        %v572 = vpop.f32.mrb[0].mxu0
        %v573 = vadd.f32 0.0, %v572
        %v574 = vpop.f32.mrb[0].mxu0
        %575 = vdwg.mxu0
        %vm576 = vcmask 31744
        %v577 = vsel %vm576, %v570, -inf
        %578 = vmax.xlane.f32.xlu0 %v577
        %v579 = vpop.xlane.xlu0 %578
        %v580 = vsel %vm576, %v573, -inf
        %581 = vmax.xlane.f32.xlu0 %v580
        %v582 = vpop.xlane.xlu0 %581
        %v583 = vsub.f32 %v570, %v579
        %v584 = vsub.f32 %v573, %v582
        %v585 = vmul.f32 %v583, 1.442695
        %v586 = vpow.pop %v585
        %v587 = vmul.f32 %v584, 1.442695
        %v588 = vpow.pop %v587
        %v589 = vsel %vm576, %v586, 0.0
        %590 = vadd.xlane.f32.xlu0 %v589
        %v591 = vpop.xlane.xlu0 %590
        %v592 = vsel %vm576, %v588, 0.0
        %593 = vadd.xlane.f32.xlu0 %v592
        %v594 = vpop.xlane.xlu0 %593
        %v595 = vrcp.pop %v591
        %v596 = vrcp.pop %v594
        %v597 = vmul.f32 %v591, %v595
        %v598 = vmul.f32 %v594, %v596
        %v599 = vsub.f32 2.0, %v597
        %v600 = vsub.f32 2.0, %v598
        %v601 = vmul.f32 %v595, %v599
        %v602 = vmul.f32 %v596, %v600
        %v603 = vmul.f32 %v591, %v601
        %v604 = vmul.f32 %v594, %v602
        %v605 = vsub.f32 2.0, %v603
        %v606 = vsub.f32 2.0, %v604
        %v607 = vmul.f32 %v601, %v605
        %v608 = vmul.f32 %v602, %v606
        %v609 = vmul.f32 %v586, %v607
        %v610 = vmul.f32 %v588, %v608
        %v611 = vpack.c.bf16 %v610, %v609
        %v613 = vsel %vm576, %v611, 0
        %vm615 = vcmask 1041408
        %v617 = vsel %vm615, %v527, 0
        %619 = vmatprep.subr.bf16.mxu0 0
        %620 = vmatpush1.bf16.msra.mxu0 %v617
        %621 = vmatprep.subr.bf16.mxu0 0
        %622 = vmatpush1.bf16.msra.mxu0 0
        %623 = vmatprep.subr.bf16.mxu0 0
        %624 = vmatpush1.bf16.msra.mxu0 0
        %625 = vmatprep.subr.bf16.mxu0 0
        %626 = vmatpush1.bf16.msra.mxu0 0
        %627 = vmatprep.subr.bf16.mxu0 0
        %628 = vmatpush1.bf16.msra.mxu0 0
        %629 = vmatprep.subr.bf16.mxu0 0
        %630 = vmatpush1.bf16.msra.mxu0 0
        %631 = vmatprep.subr.bf16.mxu0 0
        %632 = vmatpush1.bf16.msra.mxu0 0
        %633 = vmatprep.subr.bf16.mxu0 0
        %634 = vmatpush1.bf16.msra.mxu0 0
        %635 = vmatprep.subr.bf16.mxu0 0
        %636 = vmatpush1.bf16.msra.mxu0 0
        %637 = vmatprep.subr.bf16.mxu0 0
        %638 = vmatpush1.bf16.msra.mxu0 0
        %639 = vmatprep.subr.bf16.mxu0 0
        %640 = vmatpush1.bf16.msra.mxu0 0
        %641 = vmatprep.subr.bf16.mxu0 0
        %642 = vmatpush1.bf16.msra.mxu0 0
        %643 = vmatprep.subr.bf16.mxu0 0
        %644 = vmatpush1.bf16.msra.mxu0 0
        %645 = vmatprep.subr.bf16.mxu0 0
        %646 = vmatpush1.bf16.msra.mxu0 0
        %647 = vmatprep.subr.bf16.mxu0 0
        %648 = vmatpush1.bf16.msra.mxu0 0
        %649 = vmatprep.subr.bf16.mxu0 0
        %650 = vmatpush1.bf16.msra.mxu0 0
        %651 = vmatprep.mubr.bf16.mxu0 0
        %652 = vmatmul.mubr.bf16.gmra.mrb[0].mxu0 %v613
        %v653 = vpop.f32.mrb[0].mxu0
        %v654 = vadd.f32 0.0, %v653
        %v655 = vpop.f32.mrb[0].mxu0
        %v656 = vpop.f32.mrb[0].mxu0
        %v657 = vadd.f32 0.0, %v656
        %v658 = vpop.f32.mrb[0].mxu0
        %659 = vdwg.mxu0
        %v660 = vld [vmem:[%s487] sm:$0xff]
        %v661 = vld [vmem:[%s487 + $0x8] sm:$0xff]
        %663 = vset.pattern.permute.xlu0 0
        %664 = vperm.xlu0 %663, %v507
        %v665 = vpop.permute.xlu0 %664
        %668 = vset.pattern.permute.xlu0 0
        %669 = vperm.xlu0 %668, %v508
        %v670 = vpop.permute.xlu0 %669
        %v672 = vmul.f32 %v660, %v665
        %v673 = vmul.f32 %v661, %v670
        %v674 = vpack.c.bf16 %v673, %v672
        %v675 = vld [vmem:[%s492] sm:$0xff]
        %v676 = vld [vmem:[%s492 + $0x8] sm:$0xff]
        %678 = vset.pattern.permute.xlu0 0
        %679 = vperm.xlu0 %678, %v503
        %v680 = vpop.permute.xlu0 %679
        %683 = vset.pattern.permute.xlu0 0
        %684 = vperm.xlu0 %683, %v504
        %v685 = vpop.permute.xlu0 %684
        %v687 = vmul.f32 %v675, %v680
        %v688 = vmul.f32 %v676, %v685
        %v689 = vpack.c.bf16 %v688, %v687
        %690 = vxpose.xlu0.c.b16.start [1/8] %v511, 128
        %691 = vxpose.xlu0.c.b16.cont [2/8] 0, 128
        %692 = vxpose.xlu0.c.b16.cont [3/8] 0, 128
        %693 = vxpose.xlu0.c.b16.cont [4/8] 0, 128
        %694 = vxpose.xlu0.c.b16.cont [5/8] 0, 128
        %695 = vxpose.xlu0.c.b16.cont [6/8] 0, 128
        %696 = vxpose.xlu0.c.b16.cont [7/8] 0, 128
        %697 = vxpose.xlu0.c.b16.end [8/8] 0, 128
        %v698 = vpop.trf.xlu0
        %v699 = vpop.trf.xlu0
        %v700 = vpop.trf.xlu0
        %v701 = vpop.trf.xlu0
        %v702 = vpop.trf.xlu0
        %v703 = vpop.trf.xlu0
        %v704 = vpop.trf.xlu0
        %v705 = vpop.trf.xlu0
        %v707 = vsel %vm528, %v698, 0
        %709 = vmatprep.subr.bf16.mxu0 0
        %710 = vmatpush1.bf16.msra.mxu0 %v674
        %711 = vmatprep.subr.bf16.mxu0 0
        %712 = vmatpush1.bf16.msra.mxu0 0
        %713 = vmatprep.subr.bf16.mxu0 0
        %714 = vmatpush1.bf16.msra.mxu0 0
        %715 = vmatprep.subr.bf16.mxu0 0
        %716 = vmatpush1.bf16.msra.mxu0 0
        %717 = vmatprep.subr.bf16.mxu0 0
        %718 = vmatpush1.bf16.msra.mxu0 0
        %719 = vmatprep.subr.bf16.mxu0 0
        %720 = vmatpush1.bf16.msra.mxu0 0
        %721 = vmatprep.subr.bf16.mxu0 0
        %722 = vmatpush1.bf16.msra.mxu0 0
        %723 = vmatprep.subr.bf16.mxu0 0
        %724 = vmatpush1.bf16.msra.mxu0 0
        %725 = vmatprep.subr.bf16.mxu0 0
        %726 = vmatpush1.bf16.msra.mxu0 0
        %727 = vmatprep.subr.bf16.mxu0 0
        %728 = vmatpush1.bf16.msra.mxu0 0
        %729 = vmatprep.subr.bf16.mxu0 0
        %730 = vmatpush1.bf16.msra.mxu0 0
        %731 = vmatprep.subr.bf16.mxu0 0
        %732 = vmatpush1.bf16.msra.mxu0 0
        %733 = vmatprep.subr.bf16.mxu0 0
        %734 = vmatpush1.bf16.msra.mxu0 0
        %735 = vmatprep.subr.bf16.mxu0 0
        %736 = vmatpush1.bf16.msra.mxu0 0
        %737 = vmatprep.subr.bf16.mxu0 0
        %738 = vmatpush1.bf16.msra.mxu0 0
        %739 = vmatprep.subr.bf16.mxu0 0
        %740 = vmatpush1.bf16.msra.mxu0 0
        %741 = vmatprep.mubr.bf16.mxu0 0
        %742 = vmatmul.mubr.bf16.gmra.mrb[0].mxu0 %v707
        %v743 = vpop.f32.mrb[0].mxu0
        %v744 = vadd.f32 0.0, %v743
        %v745 = vpop.f32.mrb[0].mxu0
        %v746 = vpop.f32.mrb[0].mxu0
        %v747 = vadd.f32 0.0, %v746
        %v748 = vpop.f32.mrb[0].mxu0
        %749 = vdwg.mxu0
        %v750 = vsel %vm576, %v744, -inf
        %751 = vmax.xlane.f32.xlu0 %v750
        %v752 = vpop.xlane.xlu0 %751
        %v753 = vsel %vm576, %v747, -inf
        %754 = vmax.xlane.f32.xlu0 %v753
        %v755 = vpop.xlane.xlu0 %754
        %v756 = vsub.f32 %v744, %v752
        %v757 = vsub.f32 %v747, %v755
        %v758 = vmul.f32 %v756, 1.442695
        %v759 = vpow.pop %v758
        %v760 = vmul.f32 %v757, 1.442695
        %v761 = vpow.pop %v760
        %v762 = vsel %vm576, %v759, 0.0
        %763 = vadd.xlane.f32.xlu0 %v762
        %v764 = vpop.xlane.xlu0 %763
        %v765 = vsel %vm576, %v761, 0.0
        %766 = vadd.xlane.f32.xlu0 %v765
        %v767 = vpop.xlane.xlu0 %766
        %v768 = vrcp.pop %v764
        %v769 = vrcp.pop %v767
        %v770 = vmul.f32 %v764, %v768
        %v771 = vmul.f32 %v767, %v769
        %v772 = vsub.f32 2.0, %v770
        %v773 = vsub.f32 2.0, %v771
        %v774 = vmul.f32 %v768, %v772
        %v775 = vmul.f32 %v769, %v773
        %v776 = vmul.f32 %v764, %v774
        %v777 = vmul.f32 %v767, %v775
        %v778 = vsub.f32 2.0, %v776
        %v779 = vsub.f32 2.0, %v777
        %v780 = vmul.f32 %v774, %v778
        %v781 = vmul.f32 %v775, %v779
        %v782 = vmul.f32 %v759, %v780
        %v783 = vmul.f32 %v761, %v781
        %v784 = vpack.c.bf16 %v783, %v782
        %v786 = vsel %vm576, %v689, 0
        %v789 = vsel %vm576, %v784, 0
        %791 = vmatprep.subr.bf16.mxu0 0
        %792 = vmatpush1.bf16.xpose.msra.mxu0 %v789
        %793 = vmatprep.subr.bf16.mxu0 0
        %794 = vmatpush1.bf16.xpose.msra.mxu0 0
        %795 = vmatprep.subr.bf16.mxu0 0
        %796 = vmatpush1.bf16.xpose.msra.mxu0 0
        %797 = vmatprep.subr.bf16.mxu0 0
        %798 = vmatpush1.bf16.xpose.msra.mxu0 0
        %799 = vmatprep.subr.bf16.mxu0 0
        %800 = vmatpush1.bf16.xpose.msra.mxu0 0
        %801 = vmatprep.subr.bf16.mxu0 0
        %802 = vmatpush1.bf16.xpose.msra.mxu0 0
        %803 = vmatprep.subr.bf16.mxu0 0
        %804 = vmatpush1.bf16.xpose.msra.mxu0 0
        %805 = vmatprep.subr.bf16.mxu0 0
        %806 = vmatpush1.bf16.xpose.msra.mxu0 0
        %807 = vmatprep.subr.bf16.mxu0 0
        %808 = vmatpush1.bf16.xpose.msra.mxu0 0
        %809 = vmatprep.subr.bf16.mxu0 0
        %810 = vmatpush1.bf16.xpose.msra.mxu0 0
        %811 = vmatprep.subr.bf16.mxu0 0
        %812 = vmatpush1.bf16.xpose.msra.mxu0 0
        %813 = vmatprep.subr.bf16.mxu0 0
        %814 = vmatpush1.bf16.xpose.msra.mxu0 0
        %815 = vmatprep.subr.bf16.mxu0 0
        %816 = vmatpush1.bf16.xpose.msra.mxu0 0
        %817 = vmatprep.subr.bf16.mxu0 0
        %818 = vmatpush1.bf16.xpose.msra.mxu0 0
        %819 = vmatprep.subr.bf16.mxu0 0
        %820 = vmatpush1.bf16.xpose.msra.mxu0 0
        %821 = vmatprep.subr.bf16.mxu0 0
        %822 = vmatpush1.bf16.xpose.msra.mxu0 0
        %823 = vmatprep.mubr.bf16.mxu0 0
        %824 = vmatmul.mubr.bf16.gmra.mrb[0].mxu0 %v786
        %v825 = vpop.f32.mrb[0].mxu0
        %v826 = vadd.f32 0.0, %v825
        %v827 = vpop.f32.mrb[0].mxu0
        %v828 = vpop.f32.mrb[0].mxu0
        %v829 = vadd.f32 0.0, %v828
        %v830 = vpop.f32.mrb[0].mxu0
        %831 = vdwg.mxu0
        %s832 = scalar_lea.vmem %s472, 16
        %v833 = vld [vmem:[%s832] sm:$0xff]
        %v834 = vld [vmem:[%s832 + $0x8] sm:$0xff]
        %v835 = vpack.c.bf16 %v834, %v833
        %s836 = scalar_lea.vmem %s477, 4
        %v837 = vld [vmem:[%s836] sm:$0xf]
        %v838 = vmul.f32 %v837, %v516
        %v839 = vpack.c.bf16 %v838, %v838
        %s840 = scalar_lea.vmem %s482, 4
        %v841 = vld [vmem:[%s840] sm:$0xf]
        %v842 = vmul.f32 %v841, %v524
        %v843 = vpack.c.bf16 %v842, %v842
        %v845 = vsel %vm528, %v835, 0
        %v848 = vsel %vm528, %v839, 0
        %850 = vmatprep.subr.bf16.mxu0 0
        %851 = vmatpush1.bf16.xpose.msra.mxu0 %v848
        %852 = vmatprep.subr.bf16.mxu0 0
        %853 = vmatpush1.bf16.xpose.msra.mxu0 0
        %854 = vmatprep.subr.bf16.mxu0 0
        %855 = vmatpush1.bf16.xpose.msra.mxu0 0
        %856 = vmatprep.subr.bf16.mxu0 0
        %857 = vmatpush1.bf16.xpose.msra.mxu0 0
        %858 = vmatprep.subr.bf16.mxu0 0
        %859 = vmatpush1.bf16.xpose.msra.mxu0 0
        %860 = vmatprep.subr.bf16.mxu0 0
        %861 = vmatpush1.bf16.xpose.msra.mxu0 0
        %862 = vmatprep.subr.bf16.mxu0 0
        %863 = vmatpush1.bf16.xpose.msra.mxu0 0
        %864 = vmatprep.subr.bf16.mxu0 0
        %865 = vmatpush1.bf16.xpose.msra.mxu0 0
        %866 = vmatprep.subr.bf16.mxu0 0
        %867 = vmatpush1.bf16.xpose.msra.mxu0 0
        %868 = vmatprep.subr.bf16.mxu0 0
        %869 = vmatpush1.bf16.xpose.msra.mxu0 0
        %870 = vmatprep.subr.bf16.mxu0 0
        %871 = vmatpush1.bf16.xpose.msra.mxu0 0
        %872 = vmatprep.subr.bf16.mxu0 0
        %873 = vmatpush1.bf16.xpose.msra.mxu0 0
        %874 = vmatprep.subr.bf16.mxu0 0
        %875 = vmatpush1.bf16.xpose.msra.mxu0 0
        %876 = vmatprep.subr.bf16.mxu0 0
        %877 = vmatpush1.bf16.xpose.msra.mxu0 0
        %878 = vmatprep.subr.bf16.mxu0 0
        %879 = vmatpush1.bf16.xpose.msra.mxu0 0
        %880 = vmatprep.subr.bf16.mxu0 0
        %881 = vmatpush1.bf16.xpose.msra.mxu0 0
        %882 = vmatprep.mubr.bf16.mxu0 0
        %883 = vmatmul.mubr.bf16.gmra.mrb[0].mxu0 %v845
        %v884 = vpop.f32.mrb[0].mxu0
        %v885 = vadd.f32 0.0, %v884
        %v886 = vpop.f32.mrb[0].mxu0
        %v887 = vpop.f32.mrb[0].mxu0
        %v888 = vadd.f32 0.0, %v887
        %v889 = vpop.f32.mrb[0].mxu0
        %890 = vdwg.mxu0
        %v891 = vsel %vm576, %v885, -inf
        %892 = vmax.xlane.f32.xlu0 %v891
        %v893 = vpop.xlane.xlu0 %892
        %v894 = vsel %vm576, %v888, -inf
        %895 = vmax.xlane.f32.xlu0 %v894
        %v896 = vpop.xlane.xlu0 %895
        %v897 = vsub.f32 %v885, %v893
        %v898 = vsub.f32 %v888, %v896
        %v899 = vmul.f32 %v897, 1.442695
        %v900 = vpow.pop %v899
        %v901 = vmul.f32 %v898, 1.442695
        %v902 = vpow.pop %v901
        %v903 = vsel %vm576, %v900, 0.0
        %904 = vadd.xlane.f32.xlu0 %v903
        %v905 = vpop.xlane.xlu0 %904
        %v906 = vsel %vm576, %v902, 0.0
        %907 = vadd.xlane.f32.xlu0 %v906
        %v908 = vpop.xlane.xlu0 %907
        %v909 = vrcp.pop %v905
        %v910 = vrcp.pop %v908
        %v911 = vmul.f32 %v905, %v909
        %v912 = vmul.f32 %v908, %v910
        %v913 = vsub.f32 2.0, %v911
        %v914 = vsub.f32 2.0, %v912
        %v915 = vmul.f32 %v909, %v913
        %v916 = vmul.f32 %v910, %v914
        %v917 = vmul.f32 %v905, %v915
        %v918 = vmul.f32 %v908, %v916
        %v919 = vsub.f32 2.0, %v917
        %v920 = vsub.f32 2.0, %v918
        %v921 = vmul.f32 %v915, %v919
        %v922 = vmul.f32 %v916, %v920
        %v923 = vmul.f32 %v900, %v921
        %v924 = vmul.f32 %v902, %v922
        %v925 = vpack.c.bf16 %v924, %v923
        %v927 = vsel %vm576, %v925, 0
        %v930 = vsel %vm615, %v843, 0
        %932 = vmatprep.subr.bf16.mxu0 0
        %933 = vmatpush1.bf16.msra.mxu0 %v930
        %934 = vmatprep.subr.bf16.mxu0 0
        %935 = vmatpush1.bf16.msra.mxu0 0
        %936 = vmatprep.subr.bf16.mxu0 0
        %937 = vmatpush1.bf16.msra.mxu0 0
        %938 = vmatprep.subr.bf16.mxu0 0
        %939 = vmatpush1.bf16.msra.mxu0 0
        %940 = vmatprep.subr.bf16.mxu0 0
        %941 = vmatpush1.bf16.msra.mxu0 0
        %942 = vmatprep.subr.bf16.mxu0 0
        %943 = vmatpush1.bf16.msra.mxu0 0
        %944 = vmatprep.subr.bf16.mxu0 0
        %945 = vmatpush1.bf16.msra.mxu0 0
        %946 = vmatprep.subr.bf16.mxu0 0
        %947 = vmatpush1.bf16.msra.mxu0 0
        %948 = vmatprep.subr.bf16.mxu0 0
        %949 = vmatpush1.bf16.msra.mxu0 0
        %950 = vmatprep.subr.bf16.mxu0 0
        %951 = vmatpush1.bf16.msra.mxu0 0
        %952 = vmatprep.subr.bf16.mxu0 0
        %953 = vmatpush1.bf16.msra.mxu0 0
        %954 = vmatprep.subr.bf16.mxu0 0
        %955 = vmatpush1.bf16.msra.mxu0 0
        %956 = vmatprep.subr.bf16.mxu0 0
        %957 = vmatpush1.bf16.msra.mxu0 0
        %958 = vmatprep.subr.bf16.mxu0 0
        %959 = vmatpush1.bf16.msra.mxu0 0
        %960 = vmatprep.subr.bf16.mxu0 0
        %961 = vmatpush1.bf16.msra.mxu0 0
        %962 = vmatprep.subr.bf16.mxu0 0
        %963 = vmatpush1.bf16.msra.mxu0 0
        %964 = vmatprep.mubr.bf16.mxu0 0
        %965 = vmatmul.mubr.bf16.gmra.mrb[0].mxu0 %v927
        %v966 = vpop.f32.mrb[0].mxu0
        %v967 = vadd.f32 0.0, %v966
        %v968 = vpop.f32.mrb[0].mxu0
        %v969 = vpop.f32.mrb[0].mxu0
        %v970 = vadd.f32 0.0, %v969
        %v971 = vpop.f32.mrb[0].mxu0
        %972 = vdwg.mxu0
        %s973 = scalar_lea.vmem %s487, 16
        %v974 = vld [vmem:[%s973] sm:$0xff]
        %v975 = vld [vmem:[%s973 + $0x8] sm:$0xff]
        %v976 = vmul.f32 %v974, %v665
        %v977 = vmul.f32 %v975, %v670
        %v978 = vpack.c.bf16 %v977, %v976
        %s979 = scalar_lea.vmem %s492, 16
        %v980 = vld [vmem:[%s979] sm:$0xff]
        %v981 = vld [vmem:[%s979 + $0x8] sm:$0xff]
        %v982 = vmul.f32 %v980, %v680
        %v983 = vmul.f32 %v981, %v685
        %v984 = vpack.c.bf16 %v983, %v982
        %985 = vxpose.xlu0.c.b16.start [1/8] %v835, 128
        %986 = vxpose.xlu0.c.b16.cont [2/8] 0, 128
        %987 = vxpose.xlu0.c.b16.cont [3/8] 0, 128
        %988 = vxpose.xlu0.c.b16.cont [4/8] 0, 128
        %989 = vxpose.xlu0.c.b16.cont [5/8] 0, 128
        %990 = vxpose.xlu0.c.b16.cont [6/8] 0, 128
        %991 = vxpose.xlu0.c.b16.cont [7/8] 0, 128
        %992 = vxpose.xlu0.c.b16.end [8/8] 0, 128
        %v993 = vpop.trf.xlu0
        %v994 = vpop.trf.xlu0
        %v995 = vpop.trf.xlu0
        %v996 = vpop.trf.xlu0
        %v997 = vpop.trf.xlu0
        %v998 = vpop.trf.xlu0
        %v999 = vpop.trf.xlu0
        %v1000 = vpop.trf.xlu0
        %v1002 = vsel %vm528, %v993, 0
        %1004 = vmatprep.subr.bf16.mxu0 0
        %1005 = vmatpush1.bf16.msra.mxu0 %v978
        %1006 = vmatprep.subr.bf16.mxu0 0
        %1007 = vmatpush1.bf16.msra.mxu0 0
        %1008 = vmatprep.subr.bf16.mxu0 0
        %1009 = vmatpush1.bf16.msra.mxu0 0
        %1010 = vmatprep.subr.bf16.mxu0 0
        %1011 = vmatpush1.bf16.msra.mxu0 0
        %1012 = vmatprep.subr.bf16.mxu0 0
        %1013 = vmatpush1.bf16.msra.mxu0 0
        %1014 = vmatprep.subr.bf16.mxu0 0
        %1015 = vmatpush1.bf16.msra.mxu0 0
        %1016 = vmatprep.subr.bf16.mxu0 0
        %1017 = vmatpush1.bf16.msra.mxu0 0
        %1018 = vmatprep.subr.bf16.mxu0 0
        %1019 = vmatpush1.bf16.msra.mxu0 0
        %1020 = vmatprep.subr.bf16.mxu0 0
        %1021 = vmatpush1.bf16.msra.mxu0 0
        %1022 = vmatprep.subr.bf16.mxu0 0
        %1023 = vmatpush1.bf16.msra.mxu0 0
        %1024 = vmatprep.subr.bf16.mxu0 0
        %1025 = vmatpush1.bf16.msra.mxu0 0
        %1026 = vmatprep.subr.bf16.mxu0 0
        %1027 = vmatpush1.bf16.msra.mxu0 0
        %1028 = vmatprep.subr.bf16.mxu0 0
        %1029 = vmatpush1.bf16.msra.mxu0 0
        %1030 = vmatprep.subr.bf16.mxu0 0
        %1031 = vmatpush1.bf16.msra.mxu0 0
        %1032 = vmatprep.subr.bf16.mxu0 0
        %1033 = vmatpush1.bf16.msra.mxu0 0
        %1034 = vmatprep.subr.bf16.mxu0 0
        %1035 = vmatpush1.bf16.msra.mxu0 0
        %1036 = vmatprep.mubr.bf16.mxu0 0
        %1037 = vmatmul.mubr.bf16.gmra.mrb[0].mxu0 %v1002
        %v1038 = vpop.f32.mrb[0].mxu0
        %v1039 = vadd.f32 0.0, %v1038
        %v1040 = vpop.f32.mrb[0].mxu0
        %v1041 = vpop.f32.mrb[0].mxu0
        %v1042 = vadd.f32 0.0, %v1041
        %v1043 = vpop.f32.mrb[0].mxu0
        %1044 = vdwg.mxu0
        %v1045 = vsel %vm576, %v1039, -inf
        %1046 = vmax.xlane.f32.xlu0 %v1045
        %v1047 = vpop.xlane.xlu0 %1046
        %v1048 = vsel %vm576, %v1042, -inf
        %1049 = vmax.xlane.f32.xlu0 %v1048
        %v1050 = vpop.xlane.xlu0 %1049
        %v1051 = vsub.f32 %v1039, %v1047
        %v1052 = vsub.f32 %v1042, %v1050
        %v1053 = vmul.f32 %v1051, 1.442695
        %v1054 = vpow.pop %v1053
        %v1055 = vmul.f32 %v1052, 1.442695
        %v1056 = vpow.pop %v1055
        %v1057 = vsel %vm576, %v1054, 0.0
        %1058 = vadd.xlane.f32.xlu0 %v1057
        %v1059 = vpop.xlane.xlu0 %1058
        %v1060 = vsel %vm576, %v1056, 0.0
        %1061 = vadd.xlane.f32.xlu0 %v1060
        %v1062 = vpop.xlane.xlu0 %1061
        %v1063 = vrcp.pop %v1059
        %v1064 = vrcp.pop %v1062
        %v1065 = vmul.f32 %v1059, %v1063
        %v1066 = vmul.f32 %v1062, %v1064
        %v1067 = vsub.f32 2.0, %v1065
        %v1068 = vsub.f32 2.0, %v1066
        %v1069 = vmul.f32 %v1063, %v1067
        %v1070 = vmul.f32 %v1064, %v1068
        %v1071 = vmul.f32 %v1059, %v1069
        %v1072 = vmul.f32 %v1062, %v1070
        %v1073 = vsub.f32 2.0, %v1071
        %v1074 = vsub.f32 2.0, %v1072
        %v1075 = vmul.f32 %v1069, %v1073
        %v1076 = vmul.f32 %v1070, %v1074
        %v1077 = vmul.f32 %v1054, %v1075
        %v1078 = vmul.f32 %v1056, %v1076
        %v1079 = vpack.c.bf16 %v1078, %v1077
        %v1081 = vsel %vm576, %v984, 0
        %v1084 = vsel %vm576, %v1079, 0
        %1086 = vmatprep.subr.bf16.mxu0 0
        %1087 = vmatpush1.bf16.xpose.msra.mxu0 %v1084
        %1088 = vmatprep.subr.bf16.mxu0 0
        %1089 = vmatpush1.bf16.xpose.msra.mxu0 0
        %1090 = vmatprep.subr.bf16.mxu0 0
        %1091 = vmatpush1.bf16.xpose.msra.mxu0 0
        %1092 = vmatprep.subr.bf16.mxu0 0
        %1093 = vmatpush1.bf16.xpose.msra.mxu0 0
        %1094 = vmatprep.subr.bf16.mxu0 0
        %1095 = vmatpush1.bf16.xpose.msra.mxu0 0
        %1096 = vmatprep.subr.bf16.mxu0 0
        %1097 = vmatpush1.bf16.xpose.msra.mxu0 0
        %1098 = vmatprep.subr.bf16.mxu0 0
        %1099 = vmatpush1.bf16.xpose.msra.mxu0 0
        %1100 = vmatprep.subr.bf16.mxu0 0
        %1101 = vmatpush1.bf16.xpose.msra.mxu0 0
        %1102 = vmatprep.subr.bf16.mxu0 0
        %1103 = vmatpush1.bf16.xpose.msra.mxu0 0
        %1104 = vmatprep.subr.bf16.mxu0 0
        %1105 = vmatpush1.bf16.xpose.msra.mxu0 0
        %1106 = vmatprep.subr.bf16.mxu0 0
        %1107 = vmatpush1.bf16.xpose.msra.mxu0 0
        %1108 = vmatprep.subr.bf16.mxu0 0
        %1109 = vmatpush1.bf16.xpose.msra.mxu0 0
        %1110 = vmatprep.subr.bf16.mxu0 0
        %1111 = vmatpush1.bf16.xpose.msra.mxu0 0
        %1112 = vmatprep.subr.bf16.mxu0 0
        %1113 = vmatpush1.bf16.xpose.msra.mxu0 0
        %1114 = vmatprep.subr.bf16.mxu0 0
        %1115 = vmatpush1.bf16.xpose.msra.mxu0 0
        %1116 = vmatprep.subr.bf16.mxu0 0
        %1117 = vmatpush1.bf16.xpose.msra.mxu0 0
        %1118 = vmatprep.mubr.bf16.mxu0 0
        %1119 = vmatmul.mubr.bf16.gmra.mrb[0].mxu0 %v1081
        %v1120 = vpop.f32.mrb[0].mxu0
        %v1121 = vadd.f32 0.0, %v1120
        %v1122 = vpop.f32.mrb[0].mxu0
        %v1123 = vpop.f32.mrb[0].mxu0
        %v1124 = vadd.f32 0.0, %v1123
        %v1125 = vpop.f32.mrb[0].mxu0
        %1126 = vdwg.mxu0
        %1129 = vrot.lane.b32.xlu0 %v967, 16
        %v1130 = vpop.permute.xlu0 %1129
        %1131 = vrot.lane.b32.xlu0 %v970, 16
        %v1132 = vpop.permute.xlu0 %1131
        %v1135 = vsel %vm528, %v654, %v1130
        %v1136 = vsel %vm528, %v657, %v1132
        %1139 = vrot.lane.b32.xlu0 %v1121, 16
        %v1140 = vpop.permute.xlu0 %1139
        %1141 = vrot.lane.b32.xlu0 %v1124, 16
        %v1142 = vpop.permute.xlu0 %1141
        %v1145 = vsel %vm528, %v826, %v1140
        %v1146 = vsel %vm528, %v829, %v1142
        %v1147 = vld [vmem:[%s7] sm:$0x1]
        %v1148 = vmul.f32 %v1147, 0.5
        %v1149 = vld [vmem:[%s8] sm:$0x1]
        %v1150 = vmul.f32 %v1149, 0.5
        %vm1151 = vcmask 261120
        %v1152 = vsel %vm1151, %v1135, 0.0
        %1153 = vadd.xlane.f32.xlu0 %v1152
        %v1154 = vpop.xlane.xlu0 %1153
        %v1155 = vsel %vm1151, %v1136, 0.0
        %1156 = vadd.xlane.f32.xlu0 %v1155
        %v1157 = vpop.xlane.xlu0 %1156
        %v1158 = vmul.f32 %v1154, 0.03125
        %v1159 = vmul.f32 %v1157, 0.03125
        %v1160 = vsub.f32 %v1135, %v1158
        %v1161 = vsub.f32 %v1136, %v1159
        %v1162 = vmul.f32 %v1160, %v1160
        %v1163 = vmul.f32 %v1161, %v1161
        %v1164 = vsel %vm1151, %v1162, 0.0
        %1165 = vadd.xlane.f32.xlu0 %v1164
        %v1166 = vpop.xlane.xlu0 %1165
        %v1167 = vsel %vm1151, %v1163, 0.0
        %1168 = vadd.xlane.f32.xlu0 %v1167
        %v1169 = vpop.xlane.xlu0 %1168
        %v1170 = vmul.f32 %v1166, 0.03125
        %v1171 = vmul.f32 %v1169, 0.03125
        %v1172 = vadd.f32 %v1170, 1e-05
        %v1173 = vadd.f32 %v1171, 1e-05
        %v1174 = vrsqrt.pop %v1172
        %v1175 = vrsqrt.pop %v1173
        %v1176 = vmul.f32 %v1160, %v1174
        %v1177 = vmul.f32 %v1161, %v1175
        %v1179 = vlaneseq
        %v1180 = vshrl.u32 %v1179, 7
        %v1181 = vsub.s32 0, %v1180
        %v1182 = vrot.slane %v1148, %v1181
        %v1184 = vmul.f32 %v1176, %v1182
        %v1185 = vmul.f32 %v1177, %v1182
        %v1187 = vlaneseq
        %v1188 = vshrl.u32 %v1187, 7
        %v1189 = vsub.s32 0, %v1188
        %v1190 = vrot.slane %v1150, %v1189
        %v1192 = vadd.f32 %v1184, %v1190
        %v1193 = vadd.f32 %v1185, %v1190
        %v1194 = vld [vmem:[%s9] sm:$0x1]
        %v1195 = vmul.f32 %v1194, 0.5
        %v1196 = vld [vmem:[%s10] sm:$0x1]
        %v1197 = vmul.f32 %v1196, 0.5
        %v1198 = vsel %vm1151, %v1145, 0.0
        %1199 = vadd.xlane.f32.xlu0 %v1198
        %v1200 = vpop.xlane.xlu0 %1199
        %v1201 = vsel %vm1151, %v1146, 0.0
        %1202 = vadd.xlane.f32.xlu0 %v1201
        %v1203 = vpop.xlane.xlu0 %1202
        %v1204 = vmul.f32 %v1200, 0.03125
        %v1205 = vmul.f32 %v1203, 0.03125
        %v1206 = vsub.f32 %v1145, %v1204
        %v1207 = vsub.f32 %v1146, %v1205
        %v1208 = vmul.f32 %v1206, %v1206
        %v1209 = vmul.f32 %v1207, %v1207
        %v1210 = vsel %vm1151, %v1208, 0.0
        %1211 = vadd.xlane.f32.xlu0 %v1210
        %v1212 = vpop.xlane.xlu0 %1211
        %v1213 = vsel %vm1151, %v1209, 0.0
        %1214 = vadd.xlane.f32.xlu0 %v1213
        %v1215 = vpop.xlane.xlu0 %1214
        %v1216 = vmul.f32 %v1212, 0.03125
        %v1217 = vmul.f32 %v1215, 0.03125
        %v1218 = vadd.f32 %v1216, 1e-05
        %v1219 = vadd.f32 %v1217, 1e-05
        %v1220 = vrsqrt.pop %v1218
        %v1221 = vrsqrt.pop %v1219
        %v1222 = vmul.f32 %v1206, %v1220
        %v1223 = vmul.f32 %v1207, %v1221
        %v1225 = vlaneseq
        %v1226 = vshrl.u32 %v1225, 7
        %v1227 = vsub.s32 0, %v1226
        %v1228 = vrot.slane %v1195, %v1227
        %v1230 = vmul.f32 %v1222, %v1228
        %v1231 = vmul.f32 %v1223, %v1228
        %v1233 = vlaneseq
        %v1234 = vshrl.u32 %v1233, 7
        %v1235 = vsub.s32 0, %v1234
        %v1236 = vrot.slane %v1197, %v1235
        %v1238 = vadd.f32 %v1230, %v1236
        %v1239 = vadd.f32 %v1231, %v1236
        %v1240 = vadd.f32 %v1192, %v1238
        %v1241 = vadd.f32 %v1193, %v1239
        %1242 = vst.msk [vmem:[%s467] sm:$0xff] %vm528, %v1240
        %1243 = vst.msk [vmem:[%s467 + $0x8] sm:$0xff] %vm528, %v1241
        %1246 = vrot.lane.b32.xlu0 %v1240, 112
        %v1247 = vpop.permute.xlu0 %1246
        %1248 = vrot.lane.b32.xlu0 %v1241, 112
        %v1249 = vpop.permute.xlu0 %1248
        %s1252 = scalar_lea.vmem %s467, 16 [#allocation2]
        %1253 = vst.msk [vmem:[%s1252] sm:$0xff] %vm528, %v1247
        %1254 = vst.msk [vmem:[%s1252 + $0x8] sm:$0xff] %vm528, %v1249
        %s1255 = sand.u32 %s299, 1
        %s1256 = scalar_lea.sflag [#allocation3], %s1255
        %s1257 = sand.u32 %s299, 1
        %s1258 = smul.addr %s1257, 32
        %s1259 = scalar_lea.vmem [#allocation2], %s1258
        // Predicated region
        $region65: #{tpu_custom_call.1} parent=63 // pred_check
          %p1260 = pneg %p309
        $region66: #{tpu_custom_call.1} parent=63 // pred_check_branch
          %1262 = sbr.rel (%p1260) target = $region68
        $region67: #{tpu_custom_call.1} parent=63 // pred_region
          %s1264 = ssub.s32 512, 512
          %1265 = vsyncadd %s1256, %s1264
          %s1266 = smul.addr %s25, 4
          %s1267 = smul.addr %s1266, 128
          %s1268 = scalar_lea.hbm %s11, %s1267
          %s1269 = sshll.u32 %s1259, 4
          %s1270 = int_to_ptr.vmem [resolvable:$true] %s1269
          %1275 = dma.vmem_to_hbm [thread:$0]  %s1270, 512, %s1268, %s1256, 128, 128, 8
        $region68: #{tpu_custom_call.1} parent=63 // pred_fallthru
          _
      $region64: #{tpu_custom_call.1} parent=5 // pred_fallthru
        _
      %p1276 = scmp.le.s32.totalorder 2, %s20
      // Predicated region
      $region69: #{tpu_custom_call.1} parent=5 // pred_check
        %p1277 = pneg %p1276
      $region70: #{tpu_custom_call.1} parent=5 // pred_check_branch
        %1279 = sbr.rel (%p1277) target = $region72
      $region71: #{tpu_custom_call.1} parent=5 // pred_region
        %s1280 = ssub.s32 %s20, 2
        // Predicated region
        $region73: #{tpu_custom_call.1} parent=71 // pred_check
          %p1281 = pneg %p315
        $region74: #{tpu_custom_call.1} parent=71 // pred_check_branch
          %1283 = sbr.rel (%p1281) target = $region76
        $region75: #{tpu_custom_call.1} parent=71 // pred_region
          %s1284 = sand.u32 %s300, 1
          %s1285 = scalar_lea.sflag [#allocation3], %s1284
          %s1286 = sand.u32 %s300, 1
          %s1287 = smul.addr %s1286, 32
          %s1288 = scalar_lea.vmem [#allocation2], %s1287
          %1289 = dma.done %s1285, 512
        $region76: #{tpu_custom_call.1} parent=71 // pred_fallthru
          _
      $region72: #{tpu_custom_call.1} parent=5 // pred_fallthru
        _
    $region6: #{tpu_custom_call.1} parent=1 // loop_footer
      %s24 = sadd.s32 1, %s20
    $region7: #{tpu_custom_call.1} parent=1 // loop_footer_branch
      %19 = sbr.rel target = $region3
    $region8: #{tpu_custom_call.1} parent=1 // loop_exit
      _
    %1290 = vsyncpa [#allocation3], 1
    %s1291 = scalar_lea.sflag [#allocation3], 1
    %1292 = vsyncpa %s1291, 1

</llo_original>
